<compile_context>
chip_gen: v7x
topology: tpu7x:2x2x1
jax: 0.10.0
libtpu: 0.0.40
codegen_flags: <defaults>
</compile_context>

<pallas_src>
import jax
import jax.numpy as jnp
from jax.experimental import pallas as pl
from jax.experimental.pallas import tpu as pltpu

# SELU constants (match torch.nn.SELU), pre-folded.
_SELU_ALPHA = 1.6732632423543772848170429916717
_SELU_SCALE = 1.0507009873554804934193349852946
_SELU_C2 = _SELU_SCALE * _SELU_ALPHA


def _selu(x):
    # Folded constants (saves one VPU mul/elem); exp only ever sees the
    # non-positive branch values, so the dead branch never produces inf.
    # Python-float constants are weakly typed -> stays in x.dtype (bf16 or f32).
    neg = _SELU_C2 * jnp.exp(jnp.minimum(x, 0.0)) - _SELU_C2
    return jnp.where(x > 0, _SELU_SCALE * x, neg)


def _round_up(a, m):
    return ((a + m - 1) // m) * m


def _make_kernel(lat, cdt):
    use_vpu_layer1 = lat <= 8

    def kernel(x_ref, w1_ref, b1_ref, w2_ref, b2_ref, w3_ref, b3_ref,
               w4_ref, b4_ref, o_ref):
        x = x_ref[...]                                    # (tile_b, lat) cdt

        # ---- layer 1: tiny K -> unrolled VPU outer product in cdt ------------
        if use_vpu_layer1:
            w1 = w1_ref[...]                              # (lat, H) cdt
            h = x[:, 0:1] * w1[0:1, :]
            for k in range(1, lat):
                h = h + x[:, k:k + 1] * w1[k:k + 1, :]
            h = h + b1_ref[...]
        else:
            h = (jnp.dot(x, w1_ref[...],
                         preferred_element_type=jnp.float32).astype(cdt)
                 + b1_ref[...])
        h = _selu(h)

        # ---- layers 2 & 3: bf16 MXU matmuls, f32 accumulation ----------------
        lhs = h if h.dtype == jnp.bfloat16 else h.astype(jnp.bfloat16)
        h = _selu(jnp.dot(lhs, w2_ref[...],
                          preferred_element_type=jnp.float32).astype(cdt)
                  + b2_ref[...])

        lhs = h if h.dtype == jnp.bfloat16 else h.astype(jnp.bfloat16)
        h = _selu(jnp.dot(lhs, w3_ref[...],
                          preferred_element_type=jnp.float32).astype(cdt)
                  + b3_ref[...])

        # ---- layer 4: N == 1 -> VPU multiply + lane reduce (f32 accumulate) --
        prod = (h * w4_ref[...]).astype(jnp.float32)      # (tile_b, H) f32
        logit = jnp.sum(prod, axis=-1, keepdims=True) + b4_ref[...]  # (tile_b,1)

        # Overflow-safe sigmoid; the reciprocal rides the otherwise idle EUP.
        t = jnp.exp(jnp.minimum(-logit, 80.0))
        o_ref[...] = pl.reciprocal(1.0 + t, approx=True)

    return kernel


def _tpu_generation():
    try:
        kind = jax.devices()[0].device_kind.lower()
    except Exception:
        return "unknown"
    if "v5" in kind and ("lite" in kind or "5e" in kind):
        return "v5e"
    if "v6" in kind:
        return "v6e"
    if "v7" in kind:
        return "v7x"
    return "unknown"


def default_config():
    gen = _tpu_generation()
    if gen == "v5e":
        # MXU-bound on v5e: keep f32 elementwise (no bf16 VPU/EUP); win comes
        # from bigger tiles + raising the 16 MiB scoped-VMEM default.
        return dict(compute_dtype=jnp.float32, max_tile_b=1024,
                    vmem_limit_bytes=64 * 1024 * 1024, min_tiles=1)
    if gen == "v6e":
        return dict(compute_dtype=jnp.bfloat16, max_tile_b=1024,
                    vmem_limit_bytes=64 * 1024 * 1024, min_tiles=1)
    if gen == "v7x":
        # 64 MiB VMEM / 2 TCs: trim the limit and force >=2 grid steps so the
        # "parallel" batch axis actually spans both TensorCores.
        return dict(compute_dtype=jnp.bfloat16, max_tile_b=512,
                    vmem_limit_bytes=48 * 1024 * 1024, min_tiles=2)
    # Unknown chip: previously-validated conservative configuration.
    return dict(compute_dtype=jnp.float32, max_tile_b=512,
                vmem_limit_bytes=32 * 1024 * 1024, min_tiles=1)


def prepare_params(params, config=None):
    """One-time cast / reshape of the params (hoisted out of the hot wrapper).

    params: ((w1, b1), (w2, b2), (w3, b3), (w4, b4)); w_i as
            (in_features, out_features) float32, b_i as (1, out_features).
    """
    if config is None:
        config = default_config()
    cdt = config["compute_dtype"]
    (w1, b1), (w2, b2), (w3, b3), (w4, b4) = params
    lat, H = w1.shape
    prepared = dict(
        lat=lat, h_size=H,
        w1=jnp.asarray(w1, cdt),
        b1=jnp.asarray(b1, cdt).reshape(1, H),
        w2=jnp.asarray(w2, jnp.bfloat16),        # MXU operand (cast once)
        b2=jnp.asarray(b2, cdt).reshape(1, H),
        w3=jnp.asarray(w3, jnp.bfloat16),        # MXU operand (cast once)
        b3=jnp.asarray(b3, cdt).reshape(1, H),
        w4=jnp.asarray(w4, cdt).reshape(1, H),   # consumed as a broadcast row
        b4=jnp.asarray(b4, jnp.float32).reshape(1, 1),
    )
    # TODO(synk): optional fp8 w2/w3 on v7x (needs per-output-channel scales).
    return prepared, config


def factorvae_discriminator(x, prepared, config):
    """Pallas forward pass of FactorVAE_Discriminator.

    x: (B, lat) float32.  Returns sigmoid(MLP(x)).squeeze() (torch semantics).
    """
    cdt = config["compute_dtype"]
    B, lat = x.shape
    assert lat == prepared["lat"]
    H = prepared["h_size"]

    # --- batch tiling --------------------------------------------------------
    base = _round_up(B, 128)
    tile_b = min(config["max_tile_b"], base)
    if config["min_tiles"] > 1 and base > 128:
        tile_b = min(tile_b, _round_up(-(-base // config["min_tiles"]), 128))
    b_pad = _round_up(B, tile_b)
    num_tiles = b_pad // tile_b

    x = x.astype(cdt)
    if b_pad != B:
        x = jnp.pad(x, ((0, b_pad - B), (0, 0)))

    def const(shape):
        return pl.BlockSpec(shape, lambda i: (0, 0))

    itemsize = jnp.dtype(cdt).itemsize
    flops = 2 * b_pad * (lat * H + 2 * H * H + H)
    transcendentals = b_pad * (3 * H + 1)
    bytes_accessed = (b_pad * lat * itemsize + b_pad * 4          # x in, y out
                      + (lat * H + 4 * H) * itemsize              # w1 + biases + w4
                      + 2 * H * H * 2 + 4)                        # w2, w3 (bf16), b4

    out = pl.pallas_call(
        _make_kernel(lat, cdt),
        grid=(num_tiles,),
        in_specs=[
            pl.BlockSpec((tile_b, lat), lambda i: (i, 0)),   # x tile (pipelined)
            const((lat, H)),                                 # w1   (VMEM-resident)
            const((1, H)),                                   # b1
            const((H, H)),                                   # w2 (bf16)
            const((1, H)),                                   # b2
            const((H, H)),                                   # w3 (bf16)
            const((1, H)),                                   # b3
            const((1, H)),                                   # w4 row
            const((1, 1)),                                   # b4
        ],
        out_specs=pl.BlockSpec((tile_b, 1), lambda i: (i, 0)),
        out_shape=jax.ShapeDtypeStruct((b_pad, 1), jnp.float32),
        compiler_params=pltpu.CompilerParams(
            dimension_semantics=("parallel",),
            vmem_limit_bytes=config["vmem_limit_bytes"],
        ),
        cost_estimate=pl.CostEstimate(
            flops=flops,
            transcendentals=transcendentals,
            bytes_accessed=bytes_accessed,
        ),
    )(x, prepared["w1"], prepared["b1"], prepared["w2"], prepared["b2"],
      prepared["w3"], prepared["b3"], prepared["w4"], prepared["b4"])

    # torch .squeeze(): (B, 1) -> (B,) for B > 1, 0-d for B == 1.
    return jnp.squeeze(out[:B, 0])


def init_params(key, lat, h_size):
    """Deterministic LeCun-normal init (stand-in for s_init)."""
    def dense(k, fan_in, fan_out):
        kw, _ = jax.random.split(k)
        w = jax.random.normal(kw, (fan_in, fan_out), jnp.float32) / jnp.sqrt(fan_in)
        b = jnp.zeros((1, fan_out), jnp.float32)
        return w, b

    k1, k2, k3, k4 = jax.random.split(key, 4)
    return (
        dense(k1, lat, h_size),
        dense(k2, h_size, h_size),
        dense(k3, h_size, h_size),
        dense(k4, h_size, 1),
    )


def _reference(x, params):
    """Pure-JAX f32 reference matching the PyTorch module."""
    (w1, b1), (w2, b2), (w3, b3), (w4, b4) = params
    h = jax.nn.selu(x @ w1 + b1)
    h = jax.nn.selu(h @ w2 + b2)
    h = jax.nn.selu(h @ w3 + b3)
    return jnp.squeeze(jax.nn.sigmoid(h @ w4 + b4))


if __name__ == "__main__":
    # Small shapes consistent with the module (defaults are lat=1, h_size=1024).
    B, LAT, H = 8, 4, 256

    key = jax.random.PRNGKey(0)
    kx, kp = jax.random.split(key)
    x = jax.random.normal(kx, (B, LAT), jnp.float32)
    params = init_params(kp, LAT, H)

    prepared, config = prepare_params(params)           # one-time cast/reshape
    y = factorvae_discriminator(x, prepared, config)
    y = jax.block_until_ready(y)

    y_ref = _reference(x, params)
    assert y.shape == (B,), y.shape
    # bf16 MXU (and, on v6e/v7x, bf16 elementwise) + approx reciprocal ->
    # compare against the f32 reference with a bf16-level tolerance.
    tol = 2e-2 if config["compute_dtype"] == jnp.float32 else 3.5e-2
    assert jnp.allclose(y, y_ref, atol=tol, rtol=tol), \
        f"max abs diff {jnp.max(jnp.abs(y - y_ref))}"

    print("KERNEL_OK")
</pallas_src>

<mosaic_0001>
module attributes {stable_mosaic.version = 11 : i64} {
  func.func @kernel(%arg0: i32, %arg1: memref<128x4xf32, #tpu.memory_space<vmem>>, %arg2: memref<4x256xf32, #tpu.memory_space<vmem>>, %arg3: memref<1x256xf32, #tpu.memory_space<vmem>>, %arg4: memref<256x256xbf16, #tpu.memory_space<vmem>>, %arg5: memref<1x256xf32, #tpu.memory_space<vmem>>, %arg6: memref<256x256xbf16, #tpu.memory_space<vmem>>, %arg7: memref<1x256xf32, #tpu.memory_space<vmem>>, %arg8: memref<1x256xf32, #tpu.memory_space<vmem>>, %arg9: memref<1x1xf32, #tpu.memory_space<vmem>>, %arg10: memref<128x1xf32, #tpu.memory_space<vmem>>) attributes {dimension_semantics = [#tpu.dimension_semantics<parallel>], iteration_bounds = array<i64: 1>, scalar_prefetch = 0 : i64, scratch_operands = 0 : i64, tpu.core_type = #tpu.core_type<tc>, window_params = [{transform_indices = @transform_0, window_bounds = array<i64: 128, 4>}, {pipeline_mode = #tpu.pipeline_mode<synchronous>, transform_indices = @transform_1, window_bounds = array<i64: 4, 256>}, {pipeline_mode = #tpu.pipeline_mode<synchronous>, transform_indices = @transform_2, window_bounds = array<i64: 1, 256>}, {pipeline_mode = #tpu.pipeline_mode<synchronous>, transform_indices = @transform_3, window_bounds = array<i64: 256, 256>}, {pipeline_mode = #tpu.pipeline_mode<synchronous>, transform_indices = @transform_4, window_bounds = array<i64: 1, 256>}, {pipeline_mode = #tpu.pipeline_mode<synchronous>, transform_indices = @transform_5, window_bounds = array<i64: 256, 256>}, {pipeline_mode = #tpu.pipeline_mode<synchronous>, transform_indices = @transform_6, window_bounds = array<i64: 1, 256>}, {pipeline_mode = #tpu.pipeline_mode<synchronous>, transform_indices = @transform_7, window_bounds = array<i64: 1, 256>}, {pipeline_mode = #tpu.pipeline_mode<synchronous>, transform_indices = @transform_8, window_bounds = array<i64: 1, 1>}, {transform_indices = @transform_9, window_bounds = array<i64: 128, 1>}]} {
    %c0 = arith.constant 0 : index
    %c0_0 = arith.constant 0 : index
    %0 = vector.load %arg1[%c0, %c0_0] : memref<128x4xf32, #tpu.memory_space<vmem>>, vector<128x4xf32>
    %c0_1 = arith.constant 0 : index
    %c0_2 = arith.constant 0 : index
    %1 = vector.load %arg2[%c0_1, %c0_2] : memref<4x256xf32, #tpu.memory_space<vmem>>, vector<4x256xf32>
    %2 = vector.extract_strided_slice %0 {offsets = [0, 0], sizes = [128, 1], strides = [1, 1]} : vector<128x4xf32> to vector<128x1xf32>
    %3 = vector.extract_strided_slice %1 {offsets = [0, 0], sizes = [1, 256], strides = [1, 1]} : vector<4x256xf32> to vector<1x256xf32>
    %4 = vector.broadcast %2 : vector<128x1xf32> to vector<128x256xf32>
    %5 = vector.broadcast %3 : vector<1x256xf32> to vector<128x256xf32>
    %6 = arith.mulf %4, %5 : vector<128x256xf32>
    %7 = vector.extract_strided_slice %0 {offsets = [0, 1], sizes = [128, 1], strides = [1, 1]} : vector<128x4xf32> to vector<128x1xf32>
    %8 = vector.extract_strided_slice %1 {offsets = [1, 0], sizes = [1, 256], strides = [1, 1]} : vector<4x256xf32> to vector<1x256xf32>
    %9 = vector.broadcast %7 : vector<128x1xf32> to vector<128x256xf32>
    %10 = vector.broadcast %8 : vector<1x256xf32> to vector<128x256xf32>
    %11 = arith.mulf %9, %10 : vector<128x256xf32>
    %12 = arith.addf %6, %11 : vector<128x256xf32>
    %13 = vector.extract_strided_slice %0 {offsets = [0, 2], sizes = [128, 1], strides = [1, 1]} : vector<128x4xf32> to vector<128x1xf32>
    %14 = vector.extract_strided_slice %1 {offsets = [2, 0], sizes = [1, 256], strides = [1, 1]} : vector<4x256xf32> to vector<1x256xf32>
    %15 = vector.broadcast %13 : vector<128x1xf32> to vector<128x256xf32>
    %16 = vector.broadcast %14 : vector<1x256xf32> to vector<128x256xf32>
    %17 = arith.mulf %15, %16 : vector<128x256xf32>
    %18 = arith.addf %12, %17 : vector<128x256xf32>
    %19 = vector.extract_strided_slice %0 {offsets = [0, 3], sizes = [128, 1], strides = [1, 1]} : vector<128x4xf32> to vector<128x1xf32>
    %20 = vector.extract_strided_slice %1 {offsets = [3, 0], sizes = [1, 256], strides = [1, 1]} : vector<4x256xf32> to vector<1x256xf32>
    %21 = vector.broadcast %19 : vector<128x1xf32> to vector<128x256xf32>
    %22 = vector.broadcast %20 : vector<1x256xf32> to vector<128x256xf32>
    %23 = arith.mulf %21, %22 : vector<128x256xf32>
    %24 = arith.addf %18, %23 : vector<128x256xf32>
    %c0_3 = arith.constant 0 : index
    %c0_4 = arith.constant 0 : index
    %25 = vector.load %arg3[%c0_3, %c0_4] : memref<1x256xf32, #tpu.memory_space<vmem>>, vector<1x256xf32>
    %26 = vector.broadcast %25 : vector<1x256xf32> to vector<128x256xf32>
    %27 = arith.addf %24, %26 : vector<128x256xf32>
    %cst = arith.constant 0.000000e+00 : f32
    %28 = vector.broadcast %cst : f32 to vector<128x256xf32>
    %29 = arith.minimumf %27, %28 : vector<128x256xf32>
    %30 = math.exp %29 : vector<128x256xf32>
    %cst_5 = arith.constant 1.75809932 : f32
    %31 = vector.broadcast %cst_5 : f32 to vector<128x256xf32>
    %32 = arith.mulf %31, %30 : vector<128x256xf32>
    %cst_6 = arith.constant 1.75809932 : f32
    %33 = vector.broadcast %cst_6 : f32 to vector<128x256xf32>
    %34 = arith.subf %32, %33 : vector<128x256xf32>
    %cst_7 = arith.constant 0.000000e+00 : f32
    %35 = vector.broadcast %cst_7 : f32 to vector<128x256xf32>
    %36 = arith.cmpf ogt, %27, %35 : vector<128x256xf32>
    %cst_8 = arith.constant 1.05070102 : f32
    %37 = vector.broadcast %cst_8 : f32 to vector<128x256xf32>
    %38 = arith.mulf %37, %27 : vector<128x256xf32>
    %39 = arith.select %36, %38, %34 : vector<128x256xi1>, vector<128x256xf32>
    %40 = arith.truncf %39 : vector<128x256xf32> to vector<128x256xbf16>
    %c0_9 = arith.constant 0 : index
    %c0_10 = arith.constant 0 : index
    %41 = vector.load %arg4[%c0_9, %c0_10] : memref<256x256xbf16, #tpu.memory_space<vmem>>, vector<256x256xbf16>
    %cst_11 = arith.constant dense<0.000000e+00> : vector<128x256xf32>
    %42 = tpu.matmul %40, %41, %cst_11 {dimension_numbers = #tpu.dot_dimension_numbers<[1], [0], [0], [1], [0, 0, 1, 1], [], []>} : vector<128x256xbf16>, vector<256x256xbf16>, vector<128x256xf32> -> vector<128x256xf32>
    %c0_12 = arith.constant 0 : index
    %c0_13 = arith.constant 0 : index
    %43 = vector.load %arg5[%c0_12, %c0_13] : memref<1x256xf32, #tpu.memory_space<vmem>>, vector<1x256xf32>
    %44 = vector.broadcast %43 : vector<1x256xf32> to vector<128x256xf32>
    %45 = arith.addf %42, %44 : vector<128x256xf32>
    %cst_14 = arith.constant 0.000000e+00 : f32
    %46 = vector.broadcast %cst_14 : f32 to vector<128x256xf32>
    %47 = arith.minimumf %45, %46 : vector<128x256xf32>
    %48 = math.exp %47 : vector<128x256xf32>
    %cst_15 = arith.constant 1.75809932 : f32
    %49 = vector.broadcast %cst_15 : f32 to vector<128x256xf32>
    %50 = arith.mulf %49, %48 : vector<128x256xf32>
    %cst_16 = arith.constant 1.75809932 : f32
    %51 = vector.broadcast %cst_16 : f32 to vector<128x256xf32>
    %52 = arith.subf %50, %51 : vector<128x256xf32>
    %cst_17 = arith.constant 0.000000e+00 : f32
    %53 = vector.broadcast %cst_17 : f32 to vector<128x256xf32>
    %54 = arith.cmpf ogt, %45, %53 : vector<128x256xf32>
    %cst_18 = arith.constant 1.05070102 : f32
    %55 = vector.broadcast %cst_18 : f32 to vector<128x256xf32>
    %56 = arith.mulf %55, %45 : vector<128x256xf32>
    %57 = arith.select %54, %56, %52 : vector<128x256xi1>, vector<128x256xf32>
    %58 = arith.truncf %57 : vector<128x256xf32> to vector<128x256xbf16>
    %c0_19 = arith.constant 0 : index
    %c0_20 = arith.constant 0 : index
    %59 = vector.load %arg6[%c0_19, %c0_20] : memref<256x256xbf16, #tpu.memory_space<vmem>>, vector<256x256xbf16>
    %cst_21 = arith.constant dense<0.000000e+00> : vector<128x256xf32>
    %60 = tpu.matmul %58, %59, %cst_21 {dimension_numbers = #tpu.dot_dimension_numbers<[1], [0], [0], [1], [0, 0, 1, 1], [], []>} : vector<128x256xbf16>, vector<256x256xbf16>, vector<128x256xf32> -> vector<128x256xf32>
    %c0_22 = arith.constant 0 : index
    %c0_23 = arith.constant 0 : index
    %61 = vector.load %arg7[%c0_22, %c0_23] : memref<1x256xf32, #tpu.memory_space<vmem>>, vector<1x256xf32>
    %62 = vector.broadcast %61 : vector<1x256xf32> to vector<128x256xf32>
    %63 = arith.addf %60, %62 : vector<128x256xf32>
    %cst_24 = arith.constant 0.000000e+00 : f32
    %64 = vector.broadcast %cst_24 : f32 to vector<128x256xf32>
    %65 = arith.minimumf %63, %64 : vector<128x256xf32>
    %66 = math.exp %65 : vector<128x256xf32>
    %cst_25 = arith.constant 1.75809932 : f32
    %67 = vector.broadcast %cst_25 : f32 to vector<128x256xf32>
    %68 = arith.mulf %67, %66 : vector<128x256xf32>
    %cst_26 = arith.constant 1.75809932 : f32
    %69 = vector.broadcast %cst_26 : f32 to vector<128x256xf32>
    %70 = arith.subf %68, %69 : vector<128x256xf32>
    %cst_27 = arith.constant 0.000000e+00 : f32
    %71 = vector.broadcast %cst_27 : f32 to vector<128x256xf32>
    %72 = arith.cmpf ogt, %63, %71 : vector<128x256xf32>
    %cst_28 = arith.constant 1.05070102 : f32
    %73 = vector.broadcast %cst_28 : f32 to vector<128x256xf32>
    %74 = arith.mulf %73, %63 : vector<128x256xf32>
    %75 = arith.select %72, %74, %70 : vector<128x256xi1>, vector<128x256xf32>
    %c0_29 = arith.constant 0 : index
    %c0_30 = arith.constant 0 : index
    %76 = vector.load %arg8[%c0_29, %c0_30] : memref<1x256xf32, #tpu.memory_space<vmem>>, vector<1x256xf32>
    %77 = vector.broadcast %76 : vector<1x256xf32> to vector<128x256xf32>
    %78 = arith.mulf %75, %77 : vector<128x256xf32>
    %cst_31 = arith.constant dense<0.000000e+00> : vector<128xf32>
    %79 = vector.multi_reduction <add>, %78, %cst_31 [1] : vector<128x256xf32> to vector<128xf32>
    %80 = vector.shape_cast %79 : vector<128xf32> to vector<128x1xf32>
    %c0_32 = arith.constant 0 : index
    %c0_33 = arith.constant 0 : index
    %81 = vector.load %arg9[%c0_32, %c0_33] : memref<1x1xf32, #tpu.memory_space<vmem>>, vector<1x1xf32>
    %82 = vector.broadcast %81 : vector<1x1xf32> to vector<128x1xf32>
    %83 = arith.addf %80, %82 : vector<128x1xf32>
    %cst_34 = arith.constant 0.000000e+00 : f32
    %84 = vector.broadcast %cst_34 : f32 to vector<128x1xf32>
    %85 = arith.subf %84, %83 : vector<128x1xf32>
    %cst_35 = arith.constant 8.000000e+01 : f32
    %86 = vector.broadcast %cst_35 : f32 to vector<128x1xf32>
    %87 = arith.minimumf %85, %86 : vector<128x1xf32>
    %88 = math.exp %87 : vector<128x1xf32>
    %cst_36 = arith.constant 1.000000e+00 : f32
    %89 = vector.broadcast %cst_36 : f32 to vector<128x1xf32>
    %90 = arith.addf %89, %88 : vector<128x1xf32>
    %91 = tpu.reciprocal %90 {approx = true} : vector<128x1xf32> -> vector<128x1xf32>
    %c0_37 = arith.constant 0 : index
    %c0_38 = arith.constant 0 : index
    %92 = vector.load %arg10[%c0_37, %c0_38] : memref<128x1xf32, #tpu.memory_space<vmem>>, vector<128x1xf32>
    tpu.vector_store %arg10[%c0_37, %c0_38], %91 {strides = array<i32>} : memref<128x1xf32, #tpu.memory_space<vmem>>, vector<128x1xf32>,
    return
  }
  func.func @transform_0(%arg0: i32) -> (i32, i32) {
    %c0_i32 = arith.constant 0 : i32
    %c0_i32_0 = arith.constant 0 : i32
    return %arg0, %c0_i32 : i32, i32
  }
  func.func @transform_1(%arg0: i32) -> (i32, i32) {
    %c0_i32 = arith.constant 0 : i32
    %c0_i32_0 = arith.constant 0 : i32
    %c0_i32_1 = arith.constant 0 : i32
    return %c0_i32, %c0_i32_0 : i32, i32
  }
  func.func @transform_2(%arg0: i32) -> (i32, i32) {
    %c0_i32 = arith.constant 0 : i32
    %c0_i32_0 = arith.constant 0 : i32
    %c0_i32_1 = arith.constant 0 : i32
    return %c0_i32, %c0_i32_0 : i32, i32
  }
  func.func @transform_3(%arg0: i32) -> (i32, i32) {
    %c0_i32 = arith.constant 0 : i32
    %c0_i32_0 = arith.constant 0 : i32
    %c0_i32_1 = arith.constant 0 : i32
    return %c0_i32, %c0_i32_0 : i32, i32
  }
  func.func @transform_4(%arg0: i32) -> (i32, i32) {
    %c0_i32 = arith.constant 0 : i32
    %c0_i32_0 = arith.constant 0 : i32
    %c0_i32_1 = arith.constant 0 : i32
    return %c0_i32, %c0_i32_0 : i32, i32
  }
  func.func @transform_5(%arg0: i32) -> (i32, i32) {
    %c0_i32 = arith.constant 0 : i32
    %c0_i32_0 = arith.constant 0 : i32
    %c0_i32_1 = arith.constant 0 : i32
    return %c0_i32, %c0_i32_0 : i32, i32
  }
  func.func @transform_6(%arg0: i32) -> (i32, i32) {
    %c0_i32 = arith.constant 0 : i32
    %c0_i32_0 = arith.constant 0 : i32
    %c0_i32_1 = arith.constant 0 : i32
    return %c0_i32, %c0_i32_0 : i32, i32
  }
  func.func @transform_7(%arg0: i32) -> (i32, i32) {
    %c0_i32 = arith.constant 0 : i32
    %c0_i32_0 = arith.constant 0 : i32
    %c0_i32_1 = arith.constant 0 : i32
    return %c0_i32, %c0_i32_0 : i32, i32
  }
  func.func @transform_8(%arg0: i32) -> (i32, i32) {
    %c0_i32 = arith.constant 0 : i32
    %c0_i32_0 = arith.constant 0 : i32
    %c0_i32_1 = arith.constant 0 : i32
    return %c0_i32, %c0_i32_0 : i32, i32
  }
  func.func @transform_9(%arg0: i32) -> (i32, i32) {
    %c0_i32 = arith.constant 0 : i32
    %c0_i32_0 = arith.constant 0 : i32
    return %arg0, %c0_i32 : i32, i32
  }
}

</mosaic_0001>

<llo_original>
// kernel: tpu_custom_call.1
$region0: #{tpu_custom_call.1}
  #allocation0 [shape = 'u32[]', space=smem, size = 0x4, offset = 0x4, fixed_abs, tag = 'smem constant byte address 0x4 - core index']
  #allocation1 [shape = 'u32[144,128]{1,0:T(1,128)}', space=vmem, size = 0x12000, scoped, tag = 'internal scratch']
  #allocation2 [shape = 'f32[1,1]{1,0:T(1,128)S(1)}', space=vmem, size = 0x200, scoped, tag = 'scoped memory for tpu_custom_call.1']
  %s0 = inlined_call_operand.vmem [shape: f32[128,4], index: 0, kind: input, shape index: {}]
  %s1 = inlined_call_operand.vmem [shape: f32[4,256], index: 1, kind: input, shape index: {}]
  %s2 = inlined_call_operand.vmem [shape: f32[1,256], index: 2, kind: input, shape index: {}]
  %s3 = inlined_call_operand.hbm [shape: bf16[256,256], index: 3, kind: input, shape index: {}]
  %s4 = inlined_call_operand.vmem [shape: f32[1,256], index: 4, kind: input, shape index: {}]
  %s5 = inlined_call_operand.hbm [shape: bf16[256,256], index: 5, kind: input, shape index: {}]
  %s6 = inlined_call_operand.vmem [shape: f32[1,256], index: 6, kind: input, shape index: {}]
  %s7 = inlined_call_operand.vmem [shape: f32[1,256], index: 7, kind: input, shape index: {}]
  %s8 = inlined_call_operand.<no memory space> [shape: f32[1,1], index: 8, kind: input, shape index: {}]
  %s9 = inlined_call_operand.vmem [shape: f32[128,1], index: 9, kind: output, shape index: {}]
  %s10 = sld [smem:[#allocation0]]
  $region54: #{tpu_custom_call.1} parent=0
    _
  %s12 = ssub.s32 1, %s10
  %s13 = scalar_select 0, %s12, %s10
  %v14 = vstv %s8
  %15 = vst [vmem:[#allocation2] sm:$0x1] %v14
  $region1: #{tpu_custom_call.1} parent=0
    #allocation3 [shape = 'u8[131072]{0}', space=vmem, size = 0x20000, scoped, tag = 'input window, operand 3, single buffered']
    #allocation4 [shape = 's32[1]{0}', space=sflag, size = 0x4, scoped, tag = 'scoped memory for tpu_custom_call.1']
    #allocation5 [shape = 'u8[131072]{0}', space=vmem, size = 0x20000, scoped, tag = 'input window, operand 5, single buffered']
    #allocation6 [shape = 's32[1]{0}', space=sflag, size = 0x4, scoped, tag = 'scoped memory for tpu_custom_call.1']
    %16 = vsyncpa [#allocation4], 0
    %17 = vsyncpa [#allocation6], 0
    // Predicated region
    $region2: #{tpu_custom_call.1} parent=1 // pred_check
      _
    $region3: #{tpu_custom_call.1} parent=1 // pred_check_branch
      %19 = sbr.rel (0) target = $region5
    $region4: #{tpu_custom_call.1} parent=1 // pred_region
      _
    $region5: #{tpu_custom_call.1} parent=1 // pred_fallthru
      _
    // Predicated region
    $region6: #{tpu_custom_call.1} parent=1 // pred_check
      _
    $region7: #{tpu_custom_call.1} parent=1 // pred_check_branch
      %21 = sbr.rel (0) target = $region9
    $region8: #{tpu_custom_call.1} parent=1 // pred_region
      _
    $region9: #{tpu_custom_call.1} parent=1 // pred_fallthru
      _
    // Predicated region
    $region10: #{tpu_custom_call.1} parent=1 // pred_check
      _
    $region11: #{tpu_custom_call.1} parent=1 // pred_check_branch
      %23 = sbr.rel (0) target = $region13
    $region12: #{tpu_custom_call.1} parent=1 // pred_region
      _
    $region13: #{tpu_custom_call.1} parent=1 // pred_fallthru
      _
    // Predicated region
    $region14: #{tpu_custom_call.1} parent=1 // pred_check
      _
    $region15: #{tpu_custom_call.1} parent=1 // pred_check_branch
      %25 = sbr.rel (0) target = $region17
    $region16: #{tpu_custom_call.1} parent=1 // pred_region
      %s27 = ssub.s32 4096, 4096
      %28 = vsyncadd [#allocation4], %s27
      %s29 = sshll.u32 [#allocation3], 4
      %s30 = int_to_ptr.vmem [resolvable:$true] %s29
      %35 = dma.hbm_to_vmem [thread:$0]  %s3, 4096, %s30, [#allocation4], 128, 128, 8
    $region17: #{tpu_custom_call.1} parent=1 // pred_fallthru
      _
    // Predicated region
    $region18: #{tpu_custom_call.1} parent=1 // pred_check
      _
    $region19: #{tpu_custom_call.1} parent=1 // pred_check_branch
      %37 = sbr.rel (0) target = $region21
    $region20: #{tpu_custom_call.1} parent=1 // pred_region
      _
    $region21: #{tpu_custom_call.1} parent=1 // pred_fallthru
      _
    // Predicated region
    $region22: #{tpu_custom_call.1} parent=1 // pred_check
      _
    $region23: #{tpu_custom_call.1} parent=1 // pred_check_branch
      %39 = sbr.rel (0) target = $region25
    $region24: #{tpu_custom_call.1} parent=1 // pred_region
      %s41 = ssub.s32 4096, 4096
      %42 = vsyncadd [#allocation6], %s41
      %s43 = sshll.u32 [#allocation5], 4
      %s44 = int_to_ptr.vmem [resolvable:$true] %s43
      %49 = dma.hbm_to_vmem [thread:$0]  %s5, 4096, %s44, [#allocation6], 128, 128, 8
    $region25: #{tpu_custom_call.1} parent=1 // pred_fallthru
      _
    // Predicated region
    $region26: #{tpu_custom_call.1} parent=1 // pred_check
      _
    $region27: #{tpu_custom_call.1} parent=1 // pred_check_branch
      %51 = sbr.rel (0) target = $region29
    $region28: #{tpu_custom_call.1} parent=1 // pred_region
      _
    $region29: #{tpu_custom_call.1} parent=1 // pred_fallthru
      _
    // Predicated region
    $region30: #{tpu_custom_call.1} parent=1 // pred_check
      _
    $region31: #{tpu_custom_call.1} parent=1 // pred_check_branch
      %53 = sbr.rel (0) target = $region33
    $region32: #{tpu_custom_call.1} parent=1 // pred_region
      _
    $region33: #{tpu_custom_call.1} parent=1 // pred_fallthru
      _
    // Predicated region
    $region34: #{tpu_custom_call.1} parent=1 // pred_check
      _
    $region35: #{tpu_custom_call.1} parent=1 // pred_check_branch
      %55 = sbr.rel (0) target = $region37
    $region36: #{tpu_custom_call.1} parent=1 // pred_region
      _
    $region37: #{tpu_custom_call.1} parent=1 // pred_fallthru
      _
    // Predicated region
    $region38: #{tpu_custom_call.1} parent=1 // pred_check
      _
    $region39: #{tpu_custom_call.1} parent=1 // pred_check_branch
      %57 = sbr.rel (0) target = $region41
    $region40: #{tpu_custom_call.1} parent=1 // pred_region
      %58 = dma.done [#allocation4], 4096
    $region41: #{tpu_custom_call.1} parent=1 // pred_fallthru
      _
    // Predicated region
    $region42: #{tpu_custom_call.1} parent=1 // pred_check
      _
    $region43: #{tpu_custom_call.1} parent=1 // pred_check_branch
      %60 = sbr.rel (0) target = $region45
    $region44: #{tpu_custom_call.1} parent=1 // pred_region
      %61 = dma.done [#allocation6], 4096
    $region45: #{tpu_custom_call.1} parent=1 // pred_fallthru
      _
    %v62 = vld [vmem:[%s0] sm:$0xff]
    %v63 = vld [vmem:[%s0 + $0x8] sm:$0xff]
    %v64 = vld [vmem:[%s0 + $0x10] sm:$0xff]
    %v65 = vld [vmem:[%s0 + $0x18] sm:$0xff]
    %v66 = vld [vmem:[%s0 + $0x20] sm:$0xff]
    %v67 = vld [vmem:[%s0 + $0x28] sm:$0xff]
    %v68 = vld [vmem:[%s0 + $0x30] sm:$0xff]
    %v69 = vld [vmem:[%s0 + $0x38] sm:$0xff]
    %v70 = vld [vmem:[%s0 + $0x40] sm:$0xff]
    %v71 = vld [vmem:[%s0 + $0x48] sm:$0xff]
    %v72 = vld [vmem:[%s0 + $0x50] sm:$0xff]
    %v73 = vld [vmem:[%s0 + $0x58] sm:$0xff]
    %v74 = vld [vmem:[%s0 + $0x60] sm:$0xff]
    %v75 = vld [vmem:[%s0 + $0x68] sm:$0xff]
    %v76 = vld [vmem:[%s0 + $0x70] sm:$0xff]
    %v77 = vld [vmem:[%s0 + $0x78] sm:$0xff]
    %v78 = vld [vmem:[%s1] sm:$0xff]
    %80 = vset.pattern.permute.xlu0 0
    %81 = vperm.xlu0 %80, %v62
    %v82 = vpop.permute.xlu0 %81
    %85 = vset.pattern.permute.xlu0 0
    %86 = vperm.xlu0 %85, %v63
    %v87 = vpop.permute.xlu0 %86
    %90 = vset.pattern.permute.xlu0 0
    %91 = vperm.xlu0 %90, %v64
    %v92 = vpop.permute.xlu0 %91
    %95 = vset.pattern.permute.xlu0 0
    %96 = vperm.xlu0 %95, %v65
    %v97 = vpop.permute.xlu0 %96
    %100 = vset.pattern.permute.xlu0 0
    %101 = vperm.xlu0 %100, %v66
    %v102 = vpop.permute.xlu0 %101
    %105 = vset.pattern.permute.xlu0 0
    %106 = vperm.xlu0 %105, %v67
    %v107 = vpop.permute.xlu0 %106
    %110 = vset.pattern.permute.xlu0 0
    %111 = vperm.xlu0 %110, %v68
    %v112 = vpop.permute.xlu0 %111
    %115 = vset.pattern.permute.xlu0 0
    %116 = vperm.xlu0 %115, %v69
    %v117 = vpop.permute.xlu0 %116
    %120 = vset.pattern.permute.xlu0 0
    %121 = vperm.xlu0 %120, %v70
    %v122 = vpop.permute.xlu0 %121
    %125 = vset.pattern.permute.xlu0 0
    %126 = vperm.xlu0 %125, %v71
    %v127 = vpop.permute.xlu0 %126
    %130 = vset.pattern.permute.xlu0 0
    %131 = vperm.xlu0 %130, %v72
    %v132 = vpop.permute.xlu0 %131
    %135 = vset.pattern.permute.xlu0 0
    %136 = vperm.xlu0 %135, %v73
    %v137 = vpop.permute.xlu0 %136
    %140 = vset.pattern.permute.xlu0 0
    %141 = vperm.xlu0 %140, %v74
    %v142 = vpop.permute.xlu0 %141
    %145 = vset.pattern.permute.xlu0 0
    %146 = vperm.xlu0 %145, %v75
    %v147 = vpop.permute.xlu0 %146
    %150 = vset.pattern.permute.xlu0 0
    %151 = vperm.xlu0 %150, %v76
    %v152 = vpop.permute.xlu0 %151
    %155 = vset.pattern.permute.xlu0 0
    %156 = vperm.xlu0 %155, %v77
    %v157 = vpop.permute.xlu0 %156
    %v160 = vlaneseq
    %v161 = vshrl.u32 %v160, 7
    %v162 = vsub.s32 0, %v161
    %v163 = vrot.slane %v78, %v162
    %v164 = vlaneseq
    %v165 = vshrl.u32 %v164, 7
    %v166 = vsub.s32 4, %v165
    %v167 = vrot.slane %v78, %v166
    %v170 = vlaneseq
    %v171 = vshrl.u32 %v170, 7
    %v172 = vsub.s32 0, %v171
    %v173 = vrot.slane %v163, %v172
    %v174 = vlaneseq
    %v175 = vshrl.u32 %v174, 7
    %v176 = vsub.s32 0, %v175
    %v177 = vrot.slane %v167, %v176
    %v178 = vmul.f32 %v82, %v173
    %v179 = vmul.f32 %v82, %v177
    %v180 = vmul.f32 %v87, %v173
    %v181 = vmul.f32 %v87, %v177
    %v182 = vmul.f32 %v92, %v173
    %v183 = vmul.f32 %v92, %v177
    %v184 = vmul.f32 %v97, %v173
    %v185 = vmul.f32 %v97, %v177
    %v186 = vmul.f32 %v102, %v173
    %v187 = vmul.f32 %v102, %v177
    %v188 = vmul.f32 %v107, %v173
    %v189 = vmul.f32 %v107, %v177
    %v190 = vmul.f32 %v112, %v173
    %v191 = vmul.f32 %v112, %v177
    %v192 = vmul.f32 %v117, %v173
    %v193 = vmul.f32 %v117, %v177
    %v194 = vmul.f32 %v122, %v173
    %v195 = vmul.f32 %v122, %v177
    %v196 = vmul.f32 %v127, %v173
    %v197 = vmul.f32 %v127, %v177
    %v198 = vmul.f32 %v132, %v173
    %v199 = vmul.f32 %v132, %v177
    %v200 = vmul.f32 %v137, %v173
    %v201 = vmul.f32 %v137, %v177
    %v202 = vmul.f32 %v142, %v173
    %v203 = vmul.f32 %v142, %v177
    %v204 = vmul.f32 %v147, %v173
    %v205 = vmul.f32 %v147, %v177
    %v206 = vmul.f32 %v152, %v173
    %v207 = vmul.f32 %v152, %v177
    %v208 = vmul.f32 %v157, %v173
    %v209 = vmul.f32 %v157, %v177
    %210 = vset.pattern.permute.xlu0 1
    %211 = vperm.xlu0 %210, %v62
    %v212 = vpop.permute.xlu0 %211
    %214 = vset.pattern.permute.xlu0 1
    %215 = vperm.xlu0 %214, %v63
    %v216 = vpop.permute.xlu0 %215
    %218 = vset.pattern.permute.xlu0 1
    %219 = vperm.xlu0 %218, %v64
    %v220 = vpop.permute.xlu0 %219
    %222 = vset.pattern.permute.xlu0 1
    %223 = vperm.xlu0 %222, %v65
    %v224 = vpop.permute.xlu0 %223
    %226 = vset.pattern.permute.xlu0 1
    %227 = vperm.xlu0 %226, %v66
    %v228 = vpop.permute.xlu0 %227
    %230 = vset.pattern.permute.xlu0 1
    %231 = vperm.xlu0 %230, %v67
    %v232 = vpop.permute.xlu0 %231
    %234 = vset.pattern.permute.xlu0 1
    %235 = vperm.xlu0 %234, %v68
    %v236 = vpop.permute.xlu0 %235
    %238 = vset.pattern.permute.xlu0 1
    %239 = vperm.xlu0 %238, %v69
    %v240 = vpop.permute.xlu0 %239
    %242 = vset.pattern.permute.xlu0 1
    %243 = vperm.xlu0 %242, %v70
    %v244 = vpop.permute.xlu0 %243
    %246 = vset.pattern.permute.xlu0 1
    %247 = vperm.xlu0 %246, %v71
    %v248 = vpop.permute.xlu0 %247
    %250 = vset.pattern.permute.xlu0 1
    %251 = vperm.xlu0 %250, %v72
    %v252 = vpop.permute.xlu0 %251
    %254 = vset.pattern.permute.xlu0 1
    %255 = vperm.xlu0 %254, %v73
    %v256 = vpop.permute.xlu0 %255
    %258 = vset.pattern.permute.xlu0 1
    %259 = vperm.xlu0 %258, %v74
    %v260 = vpop.permute.xlu0 %259
    %262 = vset.pattern.permute.xlu0 1
    %263 = vperm.xlu0 %262, %v75
    %v264 = vpop.permute.xlu0 %263
    %266 = vset.pattern.permute.xlu0 1
    %267 = vperm.xlu0 %266, %v76
    %v268 = vpop.permute.xlu0 %267
    %270 = vset.pattern.permute.xlu0 1
    %271 = vperm.xlu0 %270, %v77
    %v272 = vpop.permute.xlu0 %271
    %v274 = vlaneseq
    %v275 = vshrl.u32 %v274, 7
    %v276 = vsub.s32 1, %v275
    %v277 = vrot.slane %v78, %v276
    %v278 = vlaneseq
    %v279 = vshrl.u32 %v278, 7
    %v280 = vsub.s32 5, %v279
    %v281 = vrot.slane %v78, %v280
    %v284 = vlaneseq
    %v285 = vshrl.u32 %v284, 7
    %v286 = vsub.s32 1, %v285
    %v287 = vrot.slane %v277, %v286
    %v288 = vlaneseq
    %v289 = vshrl.u32 %v288, 7
    %v290 = vsub.s32 1, %v289
    %v291 = vrot.slane %v281, %v290
    %v292 = vmul.f32 %v212, %v287
    %v293 = vmul.f32 %v212, %v291
    %v294 = vmul.f32 %v216, %v287
    %v295 = vmul.f32 %v216, %v291
    %v296 = vmul.f32 %v220, %v287
    %v297 = vmul.f32 %v220, %v291
    %v298 = vmul.f32 %v224, %v287
    %v299 = vmul.f32 %v224, %v291
    %v300 = vmul.f32 %v228, %v287
    %v301 = vmul.f32 %v228, %v291
    %v302 = vmul.f32 %v232, %v287
    %v303 = vmul.f32 %v232, %v291
    %v304 = vmul.f32 %v236, %v287
    %v305 = vmul.f32 %v236, %v291
    %v306 = vmul.f32 %v240, %v287
    %v307 = vmul.f32 %v240, %v291
    %v308 = vmul.f32 %v244, %v287
    %v309 = vmul.f32 %v244, %v291
    %v310 = vmul.f32 %v248, %v287
    %v311 = vmul.f32 %v248, %v291
    %v312 = vmul.f32 %v252, %v287
    %v313 = vmul.f32 %v252, %v291
    %v314 = vmul.f32 %v256, %v287
    %v315 = vmul.f32 %v256, %v291
    %v316 = vmul.f32 %v260, %v287
    %v317 = vmul.f32 %v260, %v291
    %v318 = vmul.f32 %v264, %v287
    %v319 = vmul.f32 %v264, %v291
    %v320 = vmul.f32 %v268, %v287
    %v321 = vmul.f32 %v268, %v291
    %v322 = vmul.f32 %v272, %v287
    %v323 = vmul.f32 %v272, %v291
    %v324 = vadd.f32 %v178, %v292
    %v325 = vadd.f32 %v179, %v293
    %v326 = vadd.f32 %v180, %v294
    %v327 = vadd.f32 %v181, %v295
    %v328 = vadd.f32 %v182, %v296
    %v329 = vadd.f32 %v183, %v297
    %v330 = vadd.f32 %v184, %v298
    %v331 = vadd.f32 %v185, %v299
    %v332 = vadd.f32 %v186, %v300
    %v333 = vadd.f32 %v187, %v301
    %v334 = vadd.f32 %v188, %v302
    %v335 = vadd.f32 %v189, %v303
    %v336 = vadd.f32 %v190, %v304
    %v337 = vadd.f32 %v191, %v305
    %v338 = vadd.f32 %v192, %v306
    %v339 = vadd.f32 %v193, %v307
    %v340 = vadd.f32 %v194, %v308
    %v341 = vadd.f32 %v195, %v309
    %v342 = vadd.f32 %v196, %v310
    %v343 = vadd.f32 %v197, %v311
    %v344 = vadd.f32 %v198, %v312
    %v345 = vadd.f32 %v199, %v313
    %v346 = vadd.f32 %v200, %v314
    %v347 = vadd.f32 %v201, %v315
    %v348 = vadd.f32 %v202, %v316
    %v349 = vadd.f32 %v203, %v317
    %v350 = vadd.f32 %v204, %v318
    %v351 = vadd.f32 %v205, %v319
    %v352 = vadd.f32 %v206, %v320
    %v353 = vadd.f32 %v207, %v321
    %v354 = vadd.f32 %v208, %v322
    %v355 = vadd.f32 %v209, %v323
    %356 = vset.pattern.permute.xlu0 2
    %357 = vperm.xlu0 %356, %v62
    %v358 = vpop.permute.xlu0 %357
    %360 = vset.pattern.permute.xlu0 2
    %361 = vperm.xlu0 %360, %v63
    %v362 = vpop.permute.xlu0 %361
    %364 = vset.pattern.permute.xlu0 2
    %365 = vperm.xlu0 %364, %v64
    %v366 = vpop.permute.xlu0 %365
    %368 = vset.pattern.permute.xlu0 2
    %369 = vperm.xlu0 %368, %v65
    %v370 = vpop.permute.xlu0 %369
    %372 = vset.pattern.permute.xlu0 2
    %373 = vperm.xlu0 %372, %v66
    %v374 = vpop.permute.xlu0 %373
    %376 = vset.pattern.permute.xlu0 2
    %377 = vperm.xlu0 %376, %v67
    %v378 = vpop.permute.xlu0 %377
    %380 = vset.pattern.permute.xlu0 2
    %381 = vperm.xlu0 %380, %v68
    %v382 = vpop.permute.xlu0 %381
    %384 = vset.pattern.permute.xlu0 2
    %385 = vperm.xlu0 %384, %v69
    %v386 = vpop.permute.xlu0 %385
    %388 = vset.pattern.permute.xlu0 2
    %389 = vperm.xlu0 %388, %v70
    %v390 = vpop.permute.xlu0 %389
    %392 = vset.pattern.permute.xlu0 2
    %393 = vperm.xlu0 %392, %v71
    %v394 = vpop.permute.xlu0 %393
    %396 = vset.pattern.permute.xlu0 2
    %397 = vperm.xlu0 %396, %v72
    %v398 = vpop.permute.xlu0 %397
    %400 = vset.pattern.permute.xlu0 2
    %401 = vperm.xlu0 %400, %v73
    %v402 = vpop.permute.xlu0 %401
    %404 = vset.pattern.permute.xlu0 2
    %405 = vperm.xlu0 %404, %v74
    %v406 = vpop.permute.xlu0 %405
    %408 = vset.pattern.permute.xlu0 2
    %409 = vperm.xlu0 %408, %v75
    %v410 = vpop.permute.xlu0 %409
    %412 = vset.pattern.permute.xlu0 2
    %413 = vperm.xlu0 %412, %v76
    %v414 = vpop.permute.xlu0 %413
    %416 = vset.pattern.permute.xlu0 2
    %417 = vperm.xlu0 %416, %v77
    %v418 = vpop.permute.xlu0 %417
    %v420 = vlaneseq
    %v421 = vshrl.u32 %v420, 7
    %v422 = vsub.s32 2, %v421
    %v423 = vrot.slane %v78, %v422
    %v424 = vlaneseq
    %v425 = vshrl.u32 %v424, 7
    %v426 = vsub.s32 6, %v425
    %v427 = vrot.slane %v78, %v426
    %v430 = vlaneseq
    %v431 = vshrl.u32 %v430, 7
    %v432 = vsub.s32 2, %v431
    %v433 = vrot.slane %v423, %v432
    %v434 = vlaneseq
    %v435 = vshrl.u32 %v434, 7
    %v436 = vsub.s32 2, %v435
    %v437 = vrot.slane %v427, %v436
    %v438 = vmul.f32 %v358, %v433
    %v439 = vmul.f32 %v358, %v437
    %v440 = vmul.f32 %v362, %v433
    %v441 = vmul.f32 %v362, %v437
    %v442 = vmul.f32 %v366, %v433
    %v443 = vmul.f32 %v366, %v437
    %v444 = vmul.f32 %v370, %v433
    %v445 = vmul.f32 %v370, %v437
    %v446 = vmul.f32 %v374, %v433
    %v447 = vmul.f32 %v374, %v437
    %v448 = vmul.f32 %v378, %v433
    %v449 = vmul.f32 %v378, %v437
    %v450 = vmul.f32 %v382, %v433
    %v451 = vmul.f32 %v382, %v437
    %v452 = vmul.f32 %v386, %v433
    %v453 = vmul.f32 %v386, %v437
    %v454 = vmul.f32 %v390, %v433
    %v455 = vmul.f32 %v390, %v437
    %v456 = vmul.f32 %v394, %v433
    %v457 = vmul.f32 %v394, %v437
    %v458 = vmul.f32 %v398, %v433
    %v459 = vmul.f32 %v398, %v437
    %v460 = vmul.f32 %v402, %v433
    %v461 = vmul.f32 %v402, %v437
    %v462 = vmul.f32 %v406, %v433
    %v463 = vmul.f32 %v406, %v437
    %v464 = vmul.f32 %v410, %v433
    %v465 = vmul.f32 %v410, %v437
    %v466 = vmul.f32 %v414, %v433
    %v467 = vmul.f32 %v414, %v437
    %v468 = vmul.f32 %v418, %v433
    %v469 = vmul.f32 %v418, %v437
    %v470 = vadd.f32 %v324, %v438
    %v471 = vadd.f32 %v325, %v439
    %v472 = vadd.f32 %v326, %v440
    %v473 = vadd.f32 %v327, %v441
    %v474 = vadd.f32 %v328, %v442
    %v475 = vadd.f32 %v329, %v443
    %v476 = vadd.f32 %v330, %v444
    %v477 = vadd.f32 %v331, %v445
    %v478 = vadd.f32 %v332, %v446
    %v479 = vadd.f32 %v333, %v447
    %v480 = vadd.f32 %v334, %v448
    %v481 = vadd.f32 %v335, %v449
    %v482 = vadd.f32 %v336, %v450
    %v483 = vadd.f32 %v337, %v451
    %v484 = vadd.f32 %v338, %v452
    %v485 = vadd.f32 %v339, %v453
    %v486 = vadd.f32 %v340, %v454
    %v487 = vadd.f32 %v341, %v455
    %v488 = vadd.f32 %v342, %v456
    %v489 = vadd.f32 %v343, %v457
    %v490 = vadd.f32 %v344, %v458
    %v491 = vadd.f32 %v345, %v459
    %v492 = vadd.f32 %v346, %v460
    %v493 = vadd.f32 %v347, %v461
    %v494 = vadd.f32 %v348, %v462
    %v495 = vadd.f32 %v349, %v463
    %v496 = vadd.f32 %v350, %v464
    %v497 = vadd.f32 %v351, %v465
    %v498 = vadd.f32 %v352, %v466
    %v499 = vadd.f32 %v353, %v467
    %v500 = vadd.f32 %v354, %v468
    %v501 = vadd.f32 %v355, %v469
    %502 = vset.pattern.permute.xlu0 3
    %503 = vperm.xlu0 %502, %v62
    %v504 = vpop.permute.xlu0 %503
    %506 = vset.pattern.permute.xlu0 3
    %507 = vperm.xlu0 %506, %v63
    %v508 = vpop.permute.xlu0 %507
    %510 = vset.pattern.permute.xlu0 3
    %511 = vperm.xlu0 %510, %v64
    %v512 = vpop.permute.xlu0 %511
    %514 = vset.pattern.permute.xlu0 3
    %515 = vperm.xlu0 %514, %v65
    %v516 = vpop.permute.xlu0 %515
    %518 = vset.pattern.permute.xlu0 3
    %519 = vperm.xlu0 %518, %v66
    %v520 = vpop.permute.xlu0 %519
    %522 = vset.pattern.permute.xlu0 3
    %523 = vperm.xlu0 %522, %v67
    %v524 = vpop.permute.xlu0 %523
    %526 = vset.pattern.permute.xlu0 3
    %527 = vperm.xlu0 %526, %v68
    %v528 = vpop.permute.xlu0 %527
    %530 = vset.pattern.permute.xlu0 3
    %531 = vperm.xlu0 %530, %v69
    %v532 = vpop.permute.xlu0 %531
    %534 = vset.pattern.permute.xlu0 3
    %535 = vperm.xlu0 %534, %v70
    %v536 = vpop.permute.xlu0 %535
    %538 = vset.pattern.permute.xlu0 3
    %539 = vperm.xlu0 %538, %v71
    %v540 = vpop.permute.xlu0 %539
    %542 = vset.pattern.permute.xlu0 3
    %543 = vperm.xlu0 %542, %v72
    %v544 = vpop.permute.xlu0 %543
    %546 = vset.pattern.permute.xlu0 3
    %547 = vperm.xlu0 %546, %v73
    %v548 = vpop.permute.xlu0 %547
    %550 = vset.pattern.permute.xlu0 3
    %551 = vperm.xlu0 %550, %v74
    %v552 = vpop.permute.xlu0 %551
    %554 = vset.pattern.permute.xlu0 3
    %555 = vperm.xlu0 %554, %v75
    %v556 = vpop.permute.xlu0 %555
    %558 = vset.pattern.permute.xlu0 3
    %559 = vperm.xlu0 %558, %v76
    %v560 = vpop.permute.xlu0 %559
    %562 = vset.pattern.permute.xlu0 3
    %563 = vperm.xlu0 %562, %v77
    %v564 = vpop.permute.xlu0 %563
    %v566 = vlaneseq
    %v567 = vshrl.u32 %v566, 7
    %v568 = vsub.s32 3, %v567
    %v569 = vrot.slane %v78, %v568
    %v570 = vlaneseq
    %v571 = vshrl.u32 %v570, 7
    %v572 = vsub.s32 7, %v571
    %v573 = vrot.slane %v78, %v572
    %v576 = vlaneseq
    %v577 = vshrl.u32 %v576, 7
    %v578 = vsub.s32 3, %v577
    %v579 = vrot.slane %v569, %v578
    %v580 = vlaneseq
    %v581 = vshrl.u32 %v580, 7
    %v582 = vsub.s32 3, %v581
    %v583 = vrot.slane %v573, %v582
    %v584 = vmul.f32 %v504, %v579
    %v585 = vmul.f32 %v504, %v583
    %v586 = vmul.f32 %v508, %v579
    %v587 = vmul.f32 %v508, %v583
    %v588 = vmul.f32 %v512, %v579
    %v589 = vmul.f32 %v512, %v583
    %v590 = vmul.f32 %v516, %v579
    %v591 = vmul.f32 %v516, %v583
    %v592 = vmul.f32 %v520, %v579
    %v593 = vmul.f32 %v520, %v583
    %v594 = vmul.f32 %v524, %v579
    %v595 = vmul.f32 %v524, %v583
    %v596 = vmul.f32 %v528, %v579
    %v597 = vmul.f32 %v528, %v583
    %v598 = vmul.f32 %v532, %v579
    %v599 = vmul.f32 %v532, %v583
    %v600 = vmul.f32 %v536, %v579
    %v601 = vmul.f32 %v536, %v583
    %v602 = vmul.f32 %v540, %v579
    %v603 = vmul.f32 %v540, %v583
    %v604 = vmul.f32 %v544, %v579
    %v605 = vmul.f32 %v544, %v583
    %v606 = vmul.f32 %v548, %v579
    %v607 = vmul.f32 %v548, %v583
    %v608 = vmul.f32 %v552, %v579
    %v609 = vmul.f32 %v552, %v583
    %v610 = vmul.f32 %v556, %v579
    %v611 = vmul.f32 %v556, %v583
    %v612 = vmul.f32 %v560, %v579
    %v613 = vmul.f32 %v560, %v583
    %v614 = vmul.f32 %v564, %v579
    %v615 = vmul.f32 %v564, %v583
    %v616 = vadd.f32 %v470, %v584
    %v617 = vadd.f32 %v471, %v585
    %v618 = vadd.f32 %v472, %v586
    %v619 = vadd.f32 %v473, %v587
    %v620 = vadd.f32 %v474, %v588
    %v621 = vadd.f32 %v475, %v589
    %v622 = vadd.f32 %v476, %v590
    %v623 = vadd.f32 %v477, %v591
    %v624 = vadd.f32 %v478, %v592
    %v625 = vadd.f32 %v479, %v593
    %v626 = vadd.f32 %v480, %v594
    %v627 = vadd.f32 %v481, %v595
    %v628 = vadd.f32 %v482, %v596
    %v629 = vadd.f32 %v483, %v597
    %v630 = vadd.f32 %v484, %v598
    %v631 = vadd.f32 %v485, %v599
    %v632 = vadd.f32 %v486, %v600
    %v633 = vadd.f32 %v487, %v601
    %v634 = vadd.f32 %v488, %v602
    %v635 = vadd.f32 %v489, %v603
    %v636 = vadd.f32 %v490, %v604
    %v637 = vadd.f32 %v491, %v605
    %v638 = vadd.f32 %v492, %v606
    %v639 = vadd.f32 %v493, %v607
    %v640 = vadd.f32 %v494, %v608
    %v641 = vadd.f32 %v495, %v609
    %v642 = vadd.f32 %v496, %v610
    %v643 = vadd.f32 %v497, %v611
    %v644 = vadd.f32 %v498, %v612
    %v645 = vadd.f32 %v499, %v613
    %v646 = vadd.f32 %v500, %v614
    %v647 = vadd.f32 %v501, %v615
    %v648 = vld [vmem:[%s2] sm:$0x3]
    %v650 = vlaneseq
    %v651 = vshrl.u32 %v650, 7
    %v652 = vsub.s32 0, %v651
    %v653 = vrot.slane %v648, %v652
    %v654 = vlaneseq
    %v655 = vshrl.u32 %v654, 7
    %v656 = vsub.s32 1, %v655
    %v657 = vrot.slane %v648, %v656
    %v660 = vadd.f32 %v616, %v653
    %v661 = vadd.f32 %v617, %v657
    %v662 = vadd.f32 %v618, %v653
    %v663 = vadd.f32 %v619, %v657
    %v664 = vadd.f32 %v620, %v653
    %v665 = vadd.f32 %v621, %v657
    %v666 = vadd.f32 %v622, %v653
    %v667 = vadd.f32 %v623, %v657
    %v668 = vadd.f32 %v624, %v653
    %v669 = vadd.f32 %v625, %v657
    %v670 = vadd.f32 %v626, %v653
    %v671 = vadd.f32 %v627, %v657
    %v672 = vadd.f32 %v628, %v653
    %v673 = vadd.f32 %v629, %v657
    %v674 = vadd.f32 %v630, %v653
    %v675 = vadd.f32 %v631, %v657
    %v676 = vadd.f32 %v632, %v653
    %v677 = vadd.f32 %v633, %v657
    %v678 = vadd.f32 %v634, %v653
    %v679 = vadd.f32 %v635, %v657
    %v680 = vadd.f32 %v636, %v653
    %v681 = vadd.f32 %v637, %v657
    %v682 = vadd.f32 %v638, %v653
    %v683 = vadd.f32 %v639, %v657
    %v684 = vadd.f32 %v640, %v653
    %v685 = vadd.f32 %v641, %v657
    %v686 = vadd.f32 %v642, %v653
    %v687 = vadd.f32 %v643, %v657
    %v688 = vadd.f32 %v644, %v653
    %v689 = vadd.f32 %v645, %v657
    %v690 = vadd.f32 %v646, %v653
    %v691 = vadd.f32 %v647, %v657
    %v692 = vmin.f32 %v660, 0.0
    %v693 = vmin.f32 %v661, 0.0
    %v694 = vmin.f32 %v662, 0.0
    %v695 = vmin.f32 %v663, 0.0
    %v696 = vmin.f32 %v664, 0.0
    %v697 = vmin.f32 %v665, 0.0
    %v698 = vmin.f32 %v666, 0.0
    %v699 = vmin.f32 %v667, 0.0
    %v700 = vmin.f32 %v668, 0.0
    %v701 = vmin.f32 %v669, 0.0
    %v702 = vmin.f32 %v670, 0.0
    %v703 = vmin.f32 %v671, 0.0
    %v704 = vmin.f32 %v672, 0.0
    %v705 = vmin.f32 %v673, 0.0
    %v706 = vmin.f32 %v674, 0.0
    %v707 = vmin.f32 %v675, 0.0
    %v708 = vmin.f32 %v676, 0.0
    %v709 = vmin.f32 %v677, 0.0
    %v710 = vmin.f32 %v678, 0.0
    %v711 = vmin.f32 %v679, 0.0
    %v712 = vmin.f32 %v680, 0.0
    %v713 = vmin.f32 %v681, 0.0
    %v714 = vmin.f32 %v682, 0.0
    %v715 = vmin.f32 %v683, 0.0
    %v716 = vmin.f32 %v684, 0.0
    %v717 = vmin.f32 %v685, 0.0
    %v718 = vmin.f32 %v686, 0.0
    %v719 = vmin.f32 %v687, 0.0
    %v720 = vmin.f32 %v688, 0.0
    %v721 = vmin.f32 %v689, 0.0
    %v722 = vmin.f32 %v690, 0.0
    %v723 = vmin.f32 %v691, 0.0
    %v724 = vmul.f32 %v692, 1.442695
    %v725 = vpow.pop %v724
    %v726 = vmul.f32 %v693, 1.442695
    %v727 = vpow.pop %v726
    %v728 = vmul.f32 %v694, 1.442695
    %v729 = vpow.pop %v728
    %v730 = vmul.f32 %v695, 1.442695
    %v731 = vpow.pop %v730
    %v732 = vmul.f32 %v696, 1.442695
    %v733 = vpow.pop %v732
    %v734 = vmul.f32 %v697, 1.442695
    %v735 = vpow.pop %v734
    %v736 = vmul.f32 %v698, 1.442695
    %v737 = vpow.pop %v736
    %v738 = vmul.f32 %v699, 1.442695
    %v739 = vpow.pop %v738
    %v740 = vmul.f32 %v700, 1.442695
    %v741 = vpow.pop %v740
    %v742 = vmul.f32 %v701, 1.442695
    %v743 = vpow.pop %v742
    %v744 = vmul.f32 %v702, 1.442695
    %v745 = vpow.pop %v744
    %v746 = vmul.f32 %v703, 1.442695
    %v747 = vpow.pop %v746
    %v748 = vmul.f32 %v704, 1.442695
    %v749 = vpow.pop %v748
    %v750 = vmul.f32 %v705, 1.442695
    %v751 = vpow.pop %v750
    %v752 = vmul.f32 %v706, 1.442695
    %v753 = vpow.pop %v752
    %v754 = vmul.f32 %v707, 1.442695
    %v755 = vpow.pop %v754
    %v756 = vmul.f32 %v708, 1.442695
    %v757 = vpow.pop %v756
    %v758 = vmul.f32 %v709, 1.442695
    %v759 = vpow.pop %v758
    %v760 = vmul.f32 %v710, 1.442695
    %v761 = vpow.pop %v760
    %v762 = vmul.f32 %v711, 1.442695
    %v763 = vpow.pop %v762
    %v764 = vmul.f32 %v712, 1.442695
    %v765 = vpow.pop %v764
    %v766 = vmul.f32 %v713, 1.442695
    %v767 = vpow.pop %v766
    %v768 = vmul.f32 %v714, 1.442695
    %v769 = vpow.pop %v768
    %v770 = vmul.f32 %v715, 1.442695
    %v771 = vpow.pop %v770
    %v772 = vmul.f32 %v716, 1.442695
    %v773 = vpow.pop %v772
    %v774 = vmul.f32 %v717, 1.442695
    %v775 = vpow.pop %v774
    %v776 = vmul.f32 %v718, 1.442695
    %v777 = vpow.pop %v776
    %v778 = vmul.f32 %v719, 1.442695
    %v779 = vpow.pop %v778
    %v780 = vmul.f32 %v720, 1.442695
    %v781 = vpow.pop %v780
    %v782 = vmul.f32 %v721, 1.442695
    %v783 = vpow.pop %v782
    %v784 = vmul.f32 %v722, 1.442695
    %v785 = vpow.pop %v784
    %v786 = vmul.f32 %v723, 1.442695
    %v787 = vpow.pop %v786
    %v788 = vmul.f32 %v725, 1.7580993
    %v789 = vmul.f32 %v727, 1.7580993
    %v790 = vmul.f32 %v729, 1.7580993
    %v791 = vmul.f32 %v731, 1.7580993
    %v792 = vmul.f32 %v733, 1.7580993
    %v793 = vmul.f32 %v735, 1.7580993
    %v794 = vmul.f32 %v737, 1.7580993
    %v795 = vmul.f32 %v739, 1.7580993
    %v796 = vmul.f32 %v741, 1.7580993
    %v797 = vmul.f32 %v743, 1.7580993
    %v798 = vmul.f32 %v745, 1.7580993
    %v799 = vmul.f32 %v747, 1.7580993
    %v800 = vmul.f32 %v749, 1.7580993
    %v801 = vmul.f32 %v751, 1.7580993
    %v802 = vmul.f32 %v753, 1.7580993
    %v803 = vmul.f32 %v755, 1.7580993
    %v804 = vmul.f32 %v757, 1.7580993
    %v805 = vmul.f32 %v759, 1.7580993
    %v806 = vmul.f32 %v761, 1.7580993
    %v807 = vmul.f32 %v763, 1.7580993
    %v808 = vmul.f32 %v765, 1.7580993
    %v809 = vmul.f32 %v767, 1.7580993
    %v810 = vmul.f32 %v769, 1.7580993
    %v811 = vmul.f32 %v771, 1.7580993
    %v812 = vmul.f32 %v773, 1.7580993
    %v813 = vmul.f32 %v775, 1.7580993
    %v814 = vmul.f32 %v777, 1.7580993
    %v815 = vmul.f32 %v779, 1.7580993
    %v816 = vmul.f32 %v781, 1.7580993
    %v817 = vmul.f32 %v783, 1.7580993
    %v818 = vmul.f32 %v785, 1.7580993
    %v819 = vmul.f32 %v787, 1.7580993
    %v820 = vsub.f32 %v788, 1.7580993
    %v821 = vsub.f32 %v789, 1.7580993
    %v822 = vsub.f32 %v790, 1.7580993
    %v823 = vsub.f32 %v791, 1.7580993
    %v824 = vsub.f32 %v792, 1.7580993
    %v825 = vsub.f32 %v793, 1.7580993
    %v826 = vsub.f32 %v794, 1.7580993
    %v827 = vsub.f32 %v795, 1.7580993
    %v828 = vsub.f32 %v796, 1.7580993
    %v829 = vsub.f32 %v797, 1.7580993
    %v830 = vsub.f32 %v798, 1.7580993
    %v831 = vsub.f32 %v799, 1.7580993
    %v832 = vsub.f32 %v800, 1.7580993
    %v833 = vsub.f32 %v801, 1.7580993
    %v834 = vsub.f32 %v802, 1.7580993
    %v835 = vsub.f32 %v803, 1.7580993
    %v836 = vsub.f32 %v804, 1.7580993
    %v837 = vsub.f32 %v805, 1.7580993
    %v838 = vsub.f32 %v806, 1.7580993
    %v839 = vsub.f32 %v807, 1.7580993
    %v840 = vsub.f32 %v808, 1.7580993
    %v841 = vsub.f32 %v809, 1.7580993
    %v842 = vsub.f32 %v810, 1.7580993
    %v843 = vsub.f32 %v811, 1.7580993
    %v844 = vsub.f32 %v812, 1.7580993
    %v845 = vsub.f32 %v813, 1.7580993
    %v846 = vsub.f32 %v814, 1.7580993
    %v847 = vsub.f32 %v815, 1.7580993
    %v848 = vsub.f32 %v816, 1.7580993
    %v849 = vsub.f32 %v817, 1.7580993
    %v850 = vsub.f32 %v818, 1.7580993
    %v851 = vsub.f32 %v819, 1.7580993
    %vm852 = vcmp.gt.f32.partialorder %v660, 0.0
    %vm853 = vcmp.gt.f32.partialorder %v661, 0.0
    %vm854 = vcmp.gt.f32.partialorder %v662, 0.0
    %vm855 = vcmp.gt.f32.partialorder %v663, 0.0
    %vm856 = vcmp.gt.f32.partialorder %v664, 0.0
    %vm857 = vcmp.gt.f32.partialorder %v665, 0.0
    %vm858 = vcmp.gt.f32.partialorder %v666, 0.0
    %vm859 = vcmp.gt.f32.partialorder %v667, 0.0
    %vm860 = vcmp.gt.f32.partialorder %v668, 0.0
    %vm861 = vcmp.gt.f32.partialorder %v669, 0.0
    %vm862 = vcmp.gt.f32.partialorder %v670, 0.0
    %vm863 = vcmp.gt.f32.partialorder %v671, 0.0
    %vm864 = vcmp.gt.f32.partialorder %v672, 0.0
    %vm865 = vcmp.gt.f32.partialorder %v673, 0.0
    %vm866 = vcmp.gt.f32.partialorder %v674, 0.0
    %vm867 = vcmp.gt.f32.partialorder %v675, 0.0
    %vm868 = vcmp.gt.f32.partialorder %v676, 0.0
    %vm869 = vcmp.gt.f32.partialorder %v677, 0.0
    %vm870 = vcmp.gt.f32.partialorder %v678, 0.0
    %vm871 = vcmp.gt.f32.partialorder %v679, 0.0
    %vm872 = vcmp.gt.f32.partialorder %v680, 0.0
    %vm873 = vcmp.gt.f32.partialorder %v681, 0.0
    %vm874 = vcmp.gt.f32.partialorder %v682, 0.0
    %vm875 = vcmp.gt.f32.partialorder %v683, 0.0
    %vm876 = vcmp.gt.f32.partialorder %v684, 0.0
    %vm877 = vcmp.gt.f32.partialorder %v685, 0.0
    %vm878 = vcmp.gt.f32.partialorder %v686, 0.0
    %vm879 = vcmp.gt.f32.partialorder %v687, 0.0
    %vm880 = vcmp.gt.f32.partialorder %v688, 0.0
    %vm881 = vcmp.gt.f32.partialorder %v689, 0.0
    %vm882 = vcmp.gt.f32.partialorder %v690, 0.0
    %vm883 = vcmp.gt.f32.partialorder %v691, 0.0
    %v884 = vmul.f32 %v660, 1.050701
    %v885 = vmul.f32 %v661, 1.050701
    %v886 = vmul.f32 %v662, 1.050701
    %v887 = vmul.f32 %v663, 1.050701
    %v888 = vmul.f32 %v664, 1.050701
    %v889 = vmul.f32 %v665, 1.050701
    %v890 = vmul.f32 %v666, 1.050701
    %v891 = vmul.f32 %v667, 1.050701
    %v892 = vmul.f32 %v668, 1.050701
    %v893 = vmul.f32 %v669, 1.050701
    %v894 = vmul.f32 %v670, 1.050701
    %v895 = vmul.f32 %v671, 1.050701
    %v896 = vmul.f32 %v672, 1.050701
    %v897 = vmul.f32 %v673, 1.050701
    %v898 = vmul.f32 %v674, 1.050701
    %v899 = vmul.f32 %v675, 1.050701
    %v900 = vmul.f32 %v676, 1.050701
    %v901 = vmul.f32 %v677, 1.050701
    %v902 = vmul.f32 %v678, 1.050701
    %v903 = vmul.f32 %v679, 1.050701
    %v904 = vmul.f32 %v680, 1.050701
    %v905 = vmul.f32 %v681, 1.050701
    %v906 = vmul.f32 %v682, 1.050701
    %v907 = vmul.f32 %v683, 1.050701
    %v908 = vmul.f32 %v684, 1.050701
    %v909 = vmul.f32 %v685, 1.050701
    %v910 = vmul.f32 %v686, 1.050701
    %v911 = vmul.f32 %v687, 1.050701
    %v912 = vmul.f32 %v688, 1.050701
    %v913 = vmul.f32 %v689, 1.050701
    %v914 = vmul.f32 %v690, 1.050701
    %v915 = vmul.f32 %v691, 1.050701
    %v916 = vsel %vm852, %v884, %v820
    %v917 = vsel %vm853, %v885, %v821
    %v918 = vsel %vm854, %v886, %v822
    %v919 = vsel %vm855, %v887, %v823
    %v920 = vsel %vm856, %v888, %v824
    %v921 = vsel %vm857, %v889, %v825
    %v922 = vsel %vm858, %v890, %v826
    %v923 = vsel %vm859, %v891, %v827
    %v924 = vsel %vm860, %v892, %v828
    %v925 = vsel %vm861, %v893, %v829
    %v926 = vsel %vm862, %v894, %v830
    %v927 = vsel %vm863, %v895, %v831
    %v928 = vsel %vm864, %v896, %v832
    %v929 = vsel %vm865, %v897, %v833
    %v930 = vsel %vm866, %v898, %v834
    %v931 = vsel %vm867, %v899, %v835
    %v932 = vsel %vm868, %v900, %v836
    %v933 = vsel %vm869, %v901, %v837
    %v934 = vsel %vm870, %v902, %v838
    %v935 = vsel %vm871, %v903, %v839
    %v936 = vsel %vm872, %v904, %v840
    %v937 = vsel %vm873, %v905, %v841
    %v938 = vsel %vm874, %v906, %v842
    %v939 = vsel %vm875, %v907, %v843
    %v940 = vsel %vm876, %v908, %v844
    %v941 = vsel %vm877, %v909, %v845
    %v942 = vsel %vm878, %v910, %v846
    %v943 = vsel %vm879, %v911, %v847
    %v944 = vsel %vm880, %v912, %v848
    %v945 = vsel %vm881, %v913, %v849
    %v946 = vsel %vm882, %v914, %v850
    %v947 = vsel %vm883, %v915, %v851
    %v948 = vpack.c.bf16 %v918, %v916
    %v949 = vpack.c.bf16 %v919, %v917
    %v950 = vpack.c.bf16 %v922, %v920
    %v951 = vpack.c.bf16 %v923, %v921
    %v952 = vpack.c.bf16 %v926, %v924
    %v953 = vpack.c.bf16 %v927, %v925
    %v954 = vpack.c.bf16 %v930, %v928
    %v955 = vpack.c.bf16 %v931, %v929
    %v956 = vpack.c.bf16 %v934, %v932
    %v957 = vpack.c.bf16 %v935, %v933
    %v958 = vpack.c.bf16 %v938, %v936
    %v959 = vpack.c.bf16 %v939, %v937
    %v960 = vpack.c.bf16 %v942, %v940
    %v961 = vpack.c.bf16 %v943, %v941
    %v962 = vpack.c.bf16 %v946, %v944
    %v963 = vpack.c.bf16 %v947, %v945
    %v964 = vld [vmem:[#allocation3] sm:$0xff]
    %v965 = vld [vmem:[#allocation3 + $0x8] sm:$0xff]
    %v966 = vld [vmem:[#allocation3 + $0x10] sm:$0xff]
    %v967 = vld [vmem:[#allocation3 + $0x18] sm:$0xff]
    %v968 = vld [vmem:[#allocation3 + $0x20] sm:$0xff]
    %v969 = vld [vmem:[#allocation3 + $0x28] sm:$0xff]
    %v970 = vld [vmem:[#allocation3 + $0x30] sm:$0xff]
    %v971 = vld [vmem:[#allocation3 + $0x38] sm:$0xff]
    %v972 = vld [vmem:[#allocation3 + $0x40] sm:$0xff]
    %v973 = vld [vmem:[#allocation3 + $0x48] sm:$0xff]
    %v974 = vld [vmem:[#allocation3 + $0x50] sm:$0xff]
    %v975 = vld [vmem:[#allocation3 + $0x58] sm:$0xff]
    %v976 = vld [vmem:[#allocation3 + $0x60] sm:$0xff]
    %v977 = vld [vmem:[#allocation3 + $0x68] sm:$0xff]
    %v978 = vld [vmem:[#allocation3 + $0x70] sm:$0xff]
    %v979 = vld [vmem:[#allocation3 + $0x78] sm:$0xff]
    %v980 = vld [vmem:[#allocation3 + $0x80] sm:$0xff]
    %v981 = vld [vmem:[#allocation3 + $0x88] sm:$0xff]
    %v982 = vld [vmem:[#allocation3 + $0x90] sm:$0xff]
    %v983 = vld [vmem:[#allocation3 + $0x98] sm:$0xff]
    %v984 = vld [vmem:[#allocation3 + $0xa0] sm:$0xff]
    %v985 = vld [vmem:[#allocation3 + $0xa8] sm:$0xff]
    %v986 = vld [vmem:[#allocation3 + $0xb0] sm:$0xff]
    %v987 = vld [vmem:[#allocation3 + $0xb8] sm:$0xff]
    %v988 = vld [vmem:[#allocation3 + $0xc0] sm:$0xff]
    %v989 = vld [vmem:[#allocation3 + $0xc8] sm:$0xff]
    %v990 = vld [vmem:[#allocation3 + $0xd0] sm:$0xff]
    %v991 = vld [vmem:[#allocation3 + $0xd8] sm:$0xff]
    %v992 = vld [vmem:[#allocation3 + $0xe0] sm:$0xff]
    %v993 = vld [vmem:[#allocation3 + $0xe8] sm:$0xff]
    %v994 = vld [vmem:[#allocation3 + $0xf0] sm:$0xff]
    %v995 = vld [vmem:[#allocation3 + $0xf8] sm:$0xff]
    %v996 = vld [vmem:[%s4] sm:$0x3]
    %v998 = vlaneseq
    %v999 = vshrl.u32 %v998, 7
    %v1000 = vsub.s32 0, %v999
    %v1001 = vrot.slane %v996, %v1000
    %v1002 = vlaneseq
    %v1003 = vshrl.u32 %v1002, 7
    %v1004 = vsub.s32 1, %v1003
    %v1005 = vrot.slane %v996, %v1004
    %v1040 = vunpack.c.l.b16 %v964
    %v1041 = vunpack.c.h.b16 %v964
    %v1042 = vunpack.c.l.b16 %v965
    %v1043 = vunpack.c.h.b16 %v965
    %v1044 = vunpack.c.l.b16 %v966
    %v1045 = vunpack.c.h.b16 %v966
    %v1046 = vunpack.c.l.b16 %v967
    %v1047 = vunpack.c.h.b16 %v967
    %v1048 = vunpack.c.l.b16 %v968
    %v1049 = vunpack.c.h.b16 %v968
    %v1050 = vunpack.c.l.b16 %v969
    %v1051 = vunpack.c.h.b16 %v969
    %v1052 = vunpack.c.l.b16 %v970
    %v1053 = vunpack.c.h.b16 %v970
    %v1054 = vunpack.c.l.b16 %v971
    %v1055 = vunpack.c.h.b16 %v971
    %v1056 = vunpack.c.l.b16 %v972
    %v1057 = vunpack.c.h.b16 %v972
    %v1058 = vunpack.c.l.b16 %v973
    %v1059 = vunpack.c.h.b16 %v973
    %v1060 = vunpack.c.l.b16 %v974
    %v1061 = vunpack.c.h.b16 %v974
    %v1062 = vunpack.c.l.b16 %v975
    %v1063 = vunpack.c.h.b16 %v975
    %v1064 = vunpack.c.l.b16 %v976
    %v1065 = vunpack.c.h.b16 %v976
    %v1066 = vunpack.c.l.b16 %v977
    %v1067 = vunpack.c.h.b16 %v977
    %v1068 = vunpack.c.l.b16 %v978
    %v1069 = vunpack.c.h.b16 %v978
    %v1070 = vunpack.c.l.b16 %v979
    %v1071 = vunpack.c.h.b16 %v979
    %v1072 = vunpack.c.l.b16 %v980
    %v1073 = vunpack.c.h.b16 %v980
    %v1074 = vunpack.c.l.b16 %v981
    %v1075 = vunpack.c.h.b16 %v981
    %v1076 = vunpack.c.l.b16 %v982
    %v1077 = vunpack.c.h.b16 %v982
    %v1078 = vunpack.c.l.b16 %v983
    %v1079 = vunpack.c.h.b16 %v983
    %v1080 = vunpack.c.l.b16 %v984
    %v1081 = vunpack.c.h.b16 %v984
    %v1082 = vunpack.c.l.b16 %v985
    %v1083 = vunpack.c.h.b16 %v985
    %v1084 = vunpack.c.l.b16 %v986
    %v1085 = vunpack.c.h.b16 %v986
    %v1086 = vunpack.c.l.b16 %v987
    %v1087 = vunpack.c.h.b16 %v987
    %v1088 = vunpack.c.l.b16 %v988
    %v1089 = vunpack.c.h.b16 %v988
    %v1090 = vunpack.c.l.b16 %v989
    %v1091 = vunpack.c.h.b16 %v989
    %v1092 = vunpack.c.l.b16 %v990
    %v1093 = vunpack.c.h.b16 %v990
    %v1094 = vunpack.c.l.b16 %v991
    %v1095 = vunpack.c.h.b16 %v991
    %v1096 = vunpack.c.l.b16 %v992
    %v1097 = vunpack.c.h.b16 %v992
    %v1098 = vunpack.c.l.b16 %v993
    %v1099 = vunpack.c.h.b16 %v993
    %v1100 = vunpack.c.l.b16 %v994
    %v1101 = vunpack.c.h.b16 %v994
    %v1102 = vunpack.c.l.b16 %v995
    %v1103 = vunpack.c.h.b16 %v995
    %v1104 = vpack.c.b16 %v1042, %v1040
    %v1105 = vpack.c.b16 %v1043, %v1041
    %v1106 = vpack.c.b16 %v1046, %v1044
    %v1107 = vpack.c.b16 %v1047, %v1045
    %v1108 = vpack.c.b16 %v1050, %v1048
    %v1109 = vpack.c.b16 %v1051, %v1049
    %v1110 = vpack.c.b16 %v1054, %v1052
    %v1111 = vpack.c.b16 %v1055, %v1053
    %v1112 = vpack.c.b16 %v1058, %v1056
    %v1113 = vpack.c.b16 %v1059, %v1057
    %v1114 = vpack.c.b16 %v1062, %v1060
    %v1115 = vpack.c.b16 %v1063, %v1061
    %v1116 = vpack.c.b16 %v1066, %v1064
    %v1117 = vpack.c.b16 %v1067, %v1065
    %v1118 = vpack.c.b16 %v1070, %v1068
    %v1119 = vpack.c.b16 %v1071, %v1069
    %v1120 = vpack.c.b16 %v1074, %v1072
    %v1121 = vpack.c.b16 %v1075, %v1073
    %v1122 = vpack.c.b16 %v1078, %v1076
    %v1123 = vpack.c.b16 %v1079, %v1077
    %v1124 = vpack.c.b16 %v1082, %v1080
    %v1125 = vpack.c.b16 %v1083, %v1081
    %v1126 = vpack.c.b16 %v1086, %v1084
    %v1127 = vpack.c.b16 %v1087, %v1085
    %v1128 = vpack.c.b16 %v1090, %v1088
    %v1129 = vpack.c.b16 %v1091, %v1089
    %v1130 = vpack.c.b16 %v1094, %v1092
    %v1131 = vpack.c.b16 %v1095, %v1093
    %v1132 = vpack.c.b16 %v1098, %v1096
    %v1133 = vpack.c.b16 %v1099, %v1097
    %v1134 = vpack.c.b16 %v1102, %v1100
    %v1135 = vpack.c.b16 %v1103, %v1101
    %1168 = vmatprep.subr.bf16.mxu0 %v1105
    %1169 = vmatpush1.bf16.msra.mxu0 %v1104
    %1170 = vmatprep.subr.bf16.mxu0 %v1107
    %1171 = vmatpush1.bf16.msra.mxu0 %v1106
    %1172 = vmatprep.subr.bf16.mxu0 %v1109
    %1173 = vmatpush1.bf16.msra.mxu0 %v1108
    %1174 = vmatprep.subr.bf16.mxu0 %v1111
    %1175 = vmatpush1.bf16.msra.mxu0 %v1110
    %1176 = vmatprep.subr.bf16.mxu0 %v1113
    %1177 = vmatpush1.bf16.msra.mxu0 %v1112
    %1178 = vmatprep.subr.bf16.mxu0 %v1115
    %1179 = vmatpush1.bf16.msra.mxu0 %v1114
    %1180 = vmatprep.subr.bf16.mxu0 %v1117
    %1181 = vmatpush1.bf16.msra.mxu0 %v1116
    %1182 = vmatprep.subr.bf16.mxu0 %v1119
    %1183 = vmatpush1.bf16.msra.mxu0 %v1118
    %1184 = vmatprep.subr.bf16.mxu0 %v1121
    %1185 = vmatpush1.bf16.msra.mxu0 %v1120
    %1186 = vmatprep.subr.bf16.mxu0 %v1123
    %1187 = vmatpush1.bf16.msra.mxu0 %v1122
    %1188 = vmatprep.subr.bf16.mxu0 %v1125
    %1189 = vmatpush1.bf16.msra.mxu0 %v1124
    %1190 = vmatprep.subr.bf16.mxu0 %v1127
    %1191 = vmatpush1.bf16.msra.mxu0 %v1126
    %1192 = vmatprep.subr.bf16.mxu0 %v1129
    %1193 = vmatpush1.bf16.msra.mxu0 %v1128
    %1194 = vmatprep.subr.bf16.mxu0 %v1131
    %1195 = vmatpush1.bf16.msra.mxu0 %v1130
    %1196 = vmatprep.subr.bf16.mxu0 %v1133
    %1197 = vmatpush1.bf16.msra.mxu0 %v1132
    %1198 = vmatprep.subr.bf16.mxu0 %v1135
    %1199 = vmatpush1.bf16.msra.mxu0 %v1134
    %1200 = vmatprep.mubr.bf16.mxu0 %v949
    %1201 = vmatmul.mubr.bf16.gmra.mrb[0].mxu0 %v948
    %v1202 = vpop.f32.mrb[0].mxu0
    %v1203 = vadd.f32 %v1001, %v1202
    %v1204 = vpop.f32.mrb[0].mxu0
    %v1205 = vadd.f32 %v1005, %v1204
    %v1206 = vpop.f32.mrb[0].mxu0
    %v1207 = vadd.f32 %v1001, %v1206
    %v1208 = vpop.f32.mrb[0].mxu0
    %v1209 = vadd.f32 %v1005, %v1208
    %1210 = vmatprep.mubr.bf16.mxu0 %v951
    %1211 = vmatmul.mubr.bf16.gmra.mrb[0].mxu0 %v950
    %v1212 = vpop.f32.mrb[0].mxu0
    %v1213 = vadd.f32 %v1001, %v1212
    %v1214 = vpop.f32.mrb[0].mxu0
    %v1215 = vadd.f32 %v1005, %v1214
    %v1216 = vpop.f32.mrb[0].mxu0
    %v1217 = vadd.f32 %v1001, %v1216
    %v1218 = vpop.f32.mrb[0].mxu0
    %v1219 = vadd.f32 %v1005, %v1218
    %1220 = vmatprep.mubr.bf16.mxu0 %v953
    %1221 = vmatmul.mubr.bf16.gmra.mrb[0].mxu0 %v952
    %v1222 = vpop.f32.mrb[0].mxu0
    %v1223 = vadd.f32 %v1001, %v1222
    %v1224 = vpop.f32.mrb[0].mxu0
    %v1225 = vadd.f32 %v1005, %v1224
    %v1226 = vpop.f32.mrb[0].mxu0
    %v1227 = vadd.f32 %v1001, %v1226
    %v1228 = vpop.f32.mrb[0].mxu0
    %v1229 = vadd.f32 %v1005, %v1228
    %1230 = vmatprep.mubr.bf16.mxu0 %v955
    %1231 = vmatmul.mubr.bf16.gmra.mrb[0].mxu0 %v954
    %v1232 = vpop.f32.mrb[0].mxu0
    %v1233 = vadd.f32 %v1001, %v1232
    %v1234 = vpop.f32.mrb[0].mxu0
    %v1235 = vadd.f32 %v1005, %v1234
    %v1236 = vpop.f32.mrb[0].mxu0
    %v1237 = vadd.f32 %v1001, %v1236
    %v1238 = vpop.f32.mrb[0].mxu0
    %v1239 = vadd.f32 %v1005, %v1238
    %1240 = vmatprep.mubr.bf16.mxu0 %v957
    %1241 = vmatmul.mubr.bf16.gmra.mrb[0].mxu0 %v956
    %v1242 = vpop.f32.mrb[0].mxu0
    %v1243 = vadd.f32 %v1001, %v1242
    %v1244 = vpop.f32.mrb[0].mxu0
    %v1245 = vadd.f32 %v1005, %v1244
    %v1246 = vpop.f32.mrb[0].mxu0
    %v1247 = vadd.f32 %v1001, %v1246
    %v1248 = vpop.f32.mrb[0].mxu0
    %v1249 = vadd.f32 %v1005, %v1248
    %1250 = vmatprep.mubr.bf16.mxu0 %v959
    %1251 = vmatmul.mubr.bf16.gmra.mrb[0].mxu0 %v958
    %v1252 = vpop.f32.mrb[0].mxu0
    %v1253 = vadd.f32 %v1001, %v1252
    %v1254 = vpop.f32.mrb[0].mxu0
    %v1255 = vadd.f32 %v1005, %v1254
    %v1256 = vpop.f32.mrb[0].mxu0
    %v1257 = vadd.f32 %v1001, %v1256
    %v1258 = vpop.f32.mrb[0].mxu0
    %v1259 = vadd.f32 %v1005, %v1258
    %1260 = vmatprep.mubr.bf16.mxu0 %v961
    %1261 = vmatmul.mubr.bf16.gmra.mrb[0].mxu0 %v960
    %v1262 = vpop.f32.mrb[0].mxu0
    %v1263 = vadd.f32 %v1001, %v1262
    %v1264 = vpop.f32.mrb[0].mxu0
    %v1265 = vadd.f32 %v1005, %v1264
    %v1266 = vpop.f32.mrb[0].mxu0
    %v1267 = vadd.f32 %v1001, %v1266
    %v1268 = vpop.f32.mrb[0].mxu0
    %v1269 = vadd.f32 %v1005, %v1268
    %1270 = vmatprep.mubr.bf16.mxu0 %v963
    %1271 = vmatmul.mubr.bf16.gmra.mrb[0].mxu0 %v962
    %v1272 = vpop.f32.mrb[0].mxu0
    %v1273 = vadd.f32 %v1001, %v1272
    %v1274 = vpop.f32.mrb[0].mxu0
    %v1275 = vadd.f32 %v1005, %v1274
    %v1276 = vpop.f32.mrb[0].mxu0
    %v1277 = vadd.f32 %v1001, %v1276
    %v1278 = vpop.f32.mrb[0].mxu0
    %v1279 = vadd.f32 %v1005, %v1278
    %1280 = vdwg.mxu0
    %v1281 = vmin.f32 %v1203, 0.0
    %v1282 = vmin.f32 %v1205, 0.0
    %v1283 = vmin.f32 %v1207, 0.0
    %v1284 = vmin.f32 %v1209, 0.0
    %v1285 = vmin.f32 %v1213, 0.0
    %v1286 = vmin.f32 %v1215, 0.0
    %v1287 = vmin.f32 %v1217, 0.0
    %v1288 = vmin.f32 %v1219, 0.0
    %v1289 = vmin.f32 %v1223, 0.0
    %v1290 = vmin.f32 %v1225, 0.0
    %v1291 = vmin.f32 %v1227, 0.0
    %v1292 = vmin.f32 %v1229, 0.0
    %v1293 = vmin.f32 %v1233, 0.0
    %v1294 = vmin.f32 %v1235, 0.0
    %v1295 = vmin.f32 %v1237, 0.0
    %v1296 = vmin.f32 %v1239, 0.0
    %v1297 = vmin.f32 %v1243, 0.0
    %v1298 = vmin.f32 %v1245, 0.0
    %v1299 = vmin.f32 %v1247, 0.0
    %v1300 = vmin.f32 %v1249, 0.0
    %v1301 = vmin.f32 %v1253, 0.0
    %v1302 = vmin.f32 %v1255, 0.0
    %v1303 = vmin.f32 %v1257, 0.0
    %v1304 = vmin.f32 %v1259, 0.0
    %v1305 = vmin.f32 %v1263, 0.0
    %v1306 = vmin.f32 %v1265, 0.0
    %v1307 = vmin.f32 %v1267, 0.0
    %v1308 = vmin.f32 %v1269, 0.0
    %v1309 = vmin.f32 %v1273, 0.0
    %v1310 = vmin.f32 %v1275, 0.0
    %v1311 = vmin.f32 %v1277, 0.0
    %v1312 = vmin.f32 %v1279, 0.0
    %v1313 = vmul.f32 %v1281, 1.442695
    %v1314 = vpow.pop %v1313
    %v1315 = vmul.f32 %v1282, 1.442695
    %v1316 = vpow.pop %v1315
    %v1317 = vmul.f32 %v1283, 1.442695
    %v1318 = vpow.pop %v1317
    %v1319 = vmul.f32 %v1284, 1.442695
    %v1320 = vpow.pop %v1319
    %v1321 = vmul.f32 %v1285, 1.442695
    %v1322 = vpow.pop %v1321
    %v1323 = vmul.f32 %v1286, 1.442695
    %v1324 = vpow.pop %v1323
    %v1325 = vmul.f32 %v1287, 1.442695
    %v1326 = vpow.pop %v1325
    %v1327 = vmul.f32 %v1288, 1.442695
    %v1328 = vpow.pop %v1327
    %v1329 = vmul.f32 %v1289, 1.442695
    %v1330 = vpow.pop %v1329
    %v1331 = vmul.f32 %v1290, 1.442695
    %v1332 = vpow.pop %v1331
    %v1333 = vmul.f32 %v1291, 1.442695
    %v1334 = vpow.pop %v1333
    %v1335 = vmul.f32 %v1292, 1.442695
    %v1336 = vpow.pop %v1335
    %v1337 = vmul.f32 %v1293, 1.442695
    %v1338 = vpow.pop %v1337
    %v1339 = vmul.f32 %v1294, 1.442695
    %v1340 = vpow.pop %v1339
    %v1341 = vmul.f32 %v1295, 1.442695
    %v1342 = vpow.pop %v1341
    %v1343 = vmul.f32 %v1296, 1.442695
    %v1344 = vpow.pop %v1343
    %v1345 = vmul.f32 %v1297, 1.442695
    %v1346 = vpow.pop %v1345
    %v1347 = vmul.f32 %v1298, 1.442695
    %v1348 = vpow.pop %v1347
    %v1349 = vmul.f32 %v1299, 1.442695
    %v1350 = vpow.pop %v1349
    %v1351 = vmul.f32 %v1300, 1.442695
    %v1352 = vpow.pop %v1351
    %v1353 = vmul.f32 %v1301, 1.442695
    %v1354 = vpow.pop %v1353
    %v1355 = vmul.f32 %v1302, 1.442695
    %v1356 = vpow.pop %v1355
    %v1357 = vmul.f32 %v1303, 1.442695
    %v1358 = vpow.pop %v1357
    %v1359 = vmul.f32 %v1304, 1.442695
    %v1360 = vpow.pop %v1359
    %v1361 = vmul.f32 %v1305, 1.442695
    %v1362 = vpow.pop %v1361
    %v1363 = vmul.f32 %v1306, 1.442695
    %v1364 = vpow.pop %v1363
    %v1365 = vmul.f32 %v1307, 1.442695
    %v1366 = vpow.pop %v1365
    %v1367 = vmul.f32 %v1308, 1.442695
    %v1368 = vpow.pop %v1367
    %v1369 = vmul.f32 %v1309, 1.442695
    %v1370 = vpow.pop %v1369
    %v1371 = vmul.f32 %v1310, 1.442695
    %v1372 = vpow.pop %v1371
    %v1373 = vmul.f32 %v1311, 1.442695
    %v1374 = vpow.pop %v1373
    %v1375 = vmul.f32 %v1312, 1.442695
    %v1376 = vpow.pop %v1375
    %v1377 = vmul.f32 %v1314, 1.7580993
    %v1378 = vmul.f32 %v1316, 1.7580993
    %v1379 = vmul.f32 %v1318, 1.7580993
    %v1380 = vmul.f32 %v1320, 1.7580993
    %v1381 = vmul.f32 %v1322, 1.7580993
    %v1382 = vmul.f32 %v1324, 1.7580993
    %v1383 = vmul.f32 %v1326, 1.7580993
    %v1384 = vmul.f32 %v1328, 1.7580993
    %v1385 = vmul.f32 %v1330, 1.7580993
    %v1386 = vmul.f32 %v1332, 1.7580993
    %v1387 = vmul.f32 %v1334, 1.7580993
    %v1388 = vmul.f32 %v1336, 1.7580993
    %v1389 = vmul.f32 %v1338, 1.7580993
    %v1390 = vmul.f32 %v1340, 1.7580993
    %v1391 = vmul.f32 %v1342, 1.7580993
    %v1392 = vmul.f32 %v1344, 1.7580993
    %v1393 = vmul.f32 %v1346, 1.7580993
    %v1394 = vmul.f32 %v1348, 1.7580993
    %v1395 = vmul.f32 %v1350, 1.7580993
    %v1396 = vmul.f32 %v1352, 1.7580993
    %v1397 = vmul.f32 %v1354, 1.7580993
    %v1398 = vmul.f32 %v1356, 1.7580993
    %v1399 = vmul.f32 %v1358, 1.7580993
    %v1400 = vmul.f32 %v1360, 1.7580993
    %v1401 = vmul.f32 %v1362, 1.7580993
    %v1402 = vmul.f32 %v1364, 1.7580993
    %v1403 = vmul.f32 %v1366, 1.7580993
    %v1404 = vmul.f32 %v1368, 1.7580993
    %v1405 = vmul.f32 %v1370, 1.7580993
    %v1406 = vmul.f32 %v1372, 1.7580993
    %v1407 = vmul.f32 %v1374, 1.7580993
    %v1408 = vmul.f32 %v1376, 1.7580993
    %v1409 = vsub.f32 %v1377, 1.7580993
    %v1410 = vsub.f32 %v1378, 1.7580993
    %v1411 = vsub.f32 %v1379, 1.7580993
    %v1412 = vsub.f32 %v1380, 1.7580993
    %v1413 = vsub.f32 %v1381, 1.7580993
    %v1414 = vsub.f32 %v1382, 1.7580993
    %v1415 = vsub.f32 %v1383, 1.7580993
    %v1416 = vsub.f32 %v1384, 1.7580993
    %v1417 = vsub.f32 %v1385, 1.7580993
    %v1418 = vsub.f32 %v1386, 1.7580993
    %v1419 = vsub.f32 %v1387, 1.7580993
    %v1420 = vsub.f32 %v1388, 1.7580993
    %v1421 = vsub.f32 %v1389, 1.7580993
    %v1422 = vsub.f32 %v1390, 1.7580993
    %v1423 = vsub.f32 %v1391, 1.7580993
    %v1424 = vsub.f32 %v1392, 1.7580993
    %v1425 = vsub.f32 %v1393, 1.7580993
    %v1426 = vsub.f32 %v1394, 1.7580993
    %v1427 = vsub.f32 %v1395, 1.7580993
    %v1428 = vsub.f32 %v1396, 1.7580993
    %v1429 = vsub.f32 %v1397, 1.7580993
    %v1430 = vsub.f32 %v1398, 1.7580993
    %v1431 = vsub.f32 %v1399, 1.7580993
    %v1432 = vsub.f32 %v1400, 1.7580993
    %v1433 = vsub.f32 %v1401, 1.7580993
    %v1434 = vsub.f32 %v1402, 1.7580993
    %v1435 = vsub.f32 %v1403, 1.7580993
    %v1436 = vsub.f32 %v1404, 1.7580993
    %v1437 = vsub.f32 %v1405, 1.7580993
    %v1438 = vsub.f32 %v1406, 1.7580993
    %v1439 = vsub.f32 %v1407, 1.7580993
    %v1440 = vsub.f32 %v1408, 1.7580993
    %vm1441 = vcmp.gt.f32.partialorder %v1203, 0.0
    %vm1442 = vcmp.gt.f32.partialorder %v1205, 0.0
    %vm1443 = vcmp.gt.f32.partialorder %v1207, 0.0
    %vm1444 = vcmp.gt.f32.partialorder %v1209, 0.0
    %vm1445 = vcmp.gt.f32.partialorder %v1213, 0.0
    %vm1446 = vcmp.gt.f32.partialorder %v1215, 0.0
    %vm1447 = vcmp.gt.f32.partialorder %v1217, 0.0
    %vm1448 = vcmp.gt.f32.partialorder %v1219, 0.0
    %vm1449 = vcmp.gt.f32.partialorder %v1223, 0.0
    %vm1450 = vcmp.gt.f32.partialorder %v1225, 0.0
    %vm1451 = vcmp.gt.f32.partialorder %v1227, 0.0
    %vm1452 = vcmp.gt.f32.partialorder %v1229, 0.0
    %vm1453 = vcmp.gt.f32.partialorder %v1233, 0.0
    %vm1454 = vcmp.gt.f32.partialorder %v1235, 0.0
    %vm1455 = vcmp.gt.f32.partialorder %v1237, 0.0
    %vm1456 = vcmp.gt.f32.partialorder %v1239, 0.0
    %vm1457 = vcmp.gt.f32.partialorder %v1243, 0.0
    %vm1458 = vcmp.gt.f32.partialorder %v1245, 0.0
    %vm1459 = vcmp.gt.f32.partialorder %v1247, 0.0
    %vm1460 = vcmp.gt.f32.partialorder %v1249, 0.0
    %vm1461 = vcmp.gt.f32.partialorder %v1253, 0.0
    %vm1462 = vcmp.gt.f32.partialorder %v1255, 0.0
    %vm1463 = vcmp.gt.f32.partialorder %v1257, 0.0
    %vm1464 = vcmp.gt.f32.partialorder %v1259, 0.0
    %vm1465 = vcmp.gt.f32.partialorder %v1263, 0.0
    %vm1466 = vcmp.gt.f32.partialorder %v1265, 0.0
    %vm1467 = vcmp.gt.f32.partialorder %v1267, 0.0
    %vm1468 = vcmp.gt.f32.partialorder %v1269, 0.0
    %vm1469 = vcmp.gt.f32.partialorder %v1273, 0.0
    %vm1470 = vcmp.gt.f32.partialorder %v1275, 0.0
    %vm1471 = vcmp.gt.f32.partialorder %v1277, 0.0
    %vm1472 = vcmp.gt.f32.partialorder %v1279, 0.0
    %v1473 = vmul.f32 %v1203, 1.050701
    %v1474 = vmul.f32 %v1205, 1.050701
    %v1475 = vmul.f32 %v1207, 1.050701
    %v1476 = vmul.f32 %v1209, 1.050701
    %v1477 = vmul.f32 %v1213, 1.050701
    %v1478 = vmul.f32 %v1215, 1.050701
    %v1479 = vmul.f32 %v1217, 1.050701
    %v1480 = vmul.f32 %v1219, 1.050701
    %v1481 = vmul.f32 %v1223, 1.050701
    %v1482 = vmul.f32 %v1225, 1.050701
    %v1483 = vmul.f32 %v1227, 1.050701
    %v1484 = vmul.f32 %v1229, 1.050701
    %v1485 = vmul.f32 %v1233, 1.050701
    %v1486 = vmul.f32 %v1235, 1.050701
    %v1487 = vmul.f32 %v1237, 1.050701
    %v1488 = vmul.f32 %v1239, 1.050701
    %v1489 = vmul.f32 %v1243, 1.050701
    %v1490 = vmul.f32 %v1245, 1.050701
    %v1491 = vmul.f32 %v1247, 1.050701
    %v1492 = vmul.f32 %v1249, 1.050701
    %v1493 = vmul.f32 %v1253, 1.050701
    %v1494 = vmul.f32 %v1255, 1.050701
    %v1495 = vmul.f32 %v1257, 1.050701
    %v1496 = vmul.f32 %v1259, 1.050701
    %v1497 = vmul.f32 %v1263, 1.050701
    %v1498 = vmul.f32 %v1265, 1.050701
    %v1499 = vmul.f32 %v1267, 1.050701
    %v1500 = vmul.f32 %v1269, 1.050701
    %v1501 = vmul.f32 %v1273, 1.050701
    %v1502 = vmul.f32 %v1275, 1.050701
    %v1503 = vmul.f32 %v1277, 1.050701
    %v1504 = vmul.f32 %v1279, 1.050701
    %v1505 = vsel %vm1441, %v1473, %v1409
    %v1506 = vsel %vm1442, %v1474, %v1410
    %v1507 = vsel %vm1443, %v1475, %v1411
    %v1508 = vsel %vm1444, %v1476, %v1412
    %v1509 = vsel %vm1445, %v1477, %v1413
    %v1510 = vsel %vm1446, %v1478, %v1414
    %v1511 = vsel %vm1447, %v1479, %v1415
    %v1512 = vsel %vm1448, %v1480, %v1416
    %v1513 = vsel %vm1449, %v1481, %v1417
    %v1514 = vsel %vm1450, %v1482, %v1418
    %v1515 = vsel %vm1451, %v1483, %v1419
    %v1516 = vsel %vm1452, %v1484, %v1420
    %v1517 = vsel %vm1453, %v1485, %v1421
    %v1518 = vsel %vm1454, %v1486, %v1422
    %v1519 = vsel %vm1455, %v1487, %v1423
    %v1520 = vsel %vm1456, %v1488, %v1424
    %v1521 = vsel %vm1457, %v1489, %v1425
    %v1522 = vsel %vm1458, %v1490, %v1426
    %v1523 = vsel %vm1459, %v1491, %v1427
    %v1524 = vsel %vm1460, %v1492, %v1428
    %v1525 = vsel %vm1461, %v1493, %v1429
    %v1526 = vsel %vm1462, %v1494, %v1430
    %v1527 = vsel %vm1463, %v1495, %v1431
    %v1528 = vsel %vm1464, %v1496, %v1432
    %v1529 = vsel %vm1465, %v1497, %v1433
    %v1530 = vsel %vm1466, %v1498, %v1434
    %v1531 = vsel %vm1467, %v1499, %v1435
    %v1532 = vsel %vm1468, %v1500, %v1436
    %v1533 = vsel %vm1469, %v1501, %v1437
    %v1534 = vsel %vm1470, %v1502, %v1438
    %v1535 = vsel %vm1471, %v1503, %v1439
    %v1536 = vsel %vm1472, %v1504, %v1440
    %v1537 = vpack.c.bf16 %v1507, %v1505
    %v1538 = vpack.c.bf16 %v1508, %v1506
    %v1539 = vpack.c.bf16 %v1511, %v1509
    %v1540 = vpack.c.bf16 %v1512, %v1510
    %v1541 = vpack.c.bf16 %v1515, %v1513
    %v1542 = vpack.c.bf16 %v1516, %v1514
    %v1543 = vpack.c.bf16 %v1519, %v1517
    %v1544 = vpack.c.bf16 %v1520, %v1518
    %v1545 = vpack.c.bf16 %v1523, %v1521
    %v1546 = vpack.c.bf16 %v1524, %v1522
    %v1547 = vpack.c.bf16 %v1527, %v1525
    %v1548 = vpack.c.bf16 %v1528, %v1526
    %v1549 = vpack.c.bf16 %v1531, %v1529
    %v1550 = vpack.c.bf16 %v1532, %v1530
    %v1551 = vpack.c.bf16 %v1535, %v1533
    %v1552 = vpack.c.bf16 %v1536, %v1534
    %v1553 = vld [vmem:[#allocation5] sm:$0xff]
    %v1554 = vld [vmem:[#allocation5 + $0x8] sm:$0xff]
    %v1555 = vld [vmem:[#allocation5 + $0x10] sm:$0xff]
    %v1556 = vld [vmem:[#allocation5 + $0x18] sm:$0xff]
    %v1557 = vld [vmem:[#allocation5 + $0x20] sm:$0xff]
    %v1558 = vld [vmem:[#allocation5 + $0x28] sm:$0xff]
    %v1559 = vld [vmem:[#allocation5 + $0x30] sm:$0xff]
    %v1560 = vld [vmem:[#allocation5 + $0x38] sm:$0xff]
    %v1561 = vld [vmem:[#allocation5 + $0x40] sm:$0xff]
    %v1562 = vld [vmem:[#allocation5 + $0x48] sm:$0xff]
    %v1563 = vld [vmem:[#allocation5 + $0x50] sm:$0xff]
    %v1564 = vld [vmem:[#allocation5 + $0x58] sm:$0xff]
    %v1565 = vld [vmem:[#allocation5 + $0x60] sm:$0xff]
    %v1566 = vld [vmem:[#allocation5 + $0x68] sm:$0xff]
    %v1567 = vld [vmem:[#allocation5 + $0x70] sm:$0xff]
    %v1568 = vld [vmem:[#allocation5 + $0x78] sm:$0xff]
    %v1569 = vld [vmem:[#allocation5 + $0x80] sm:$0xff]
    %v1570 = vld [vmem:[#allocation5 + $0x88] sm:$0xff]
    %v1571 = vld [vmem:[#allocation5 + $0x90] sm:$0xff]
    %v1572 = vld [vmem:[#allocation5 + $0x98] sm:$0xff]
    %v1573 = vld [vmem:[#allocation5 + $0xa0] sm:$0xff]
    %v1574 = vld [vmem:[#allocation5 + $0xa8] sm:$0xff]
    %v1575 = vld [vmem:[#allocation5 + $0xb0] sm:$0xff]
    %v1576 = vld [vmem:[#allocation5 + $0xb8] sm:$0xff]
    %v1577 = vld [vmem:[#allocation5 + $0xc0] sm:$0xff]
    %v1578 = vld [vmem:[#allocation5 + $0xc8] sm:$0xff]
    %v1579 = vld [vmem:[#allocation5 + $0xd0] sm:$0xff]
    %v1580 = vld [vmem:[#allocation5 + $0xd8] sm:$0xff]
    %v1581 = vld [vmem:[#allocation5 + $0xe0] sm:$0xff]
    %v1582 = vld [vmem:[#allocation5 + $0xe8] sm:$0xff]
    %v1583 = vld [vmem:[#allocation5 + $0xf0] sm:$0xff]
    %v1584 = vld [vmem:[#allocation5 + $0xf8] sm:$0xff]
    %v1585 = vld [vmem:[%s6] sm:$0x3]
    %v1587 = vlaneseq
    %v1588 = vshrl.u32 %v1587, 7
    %v1589 = vsub.s32 0, %v1588
    %v1590 = vrot.slane %v1585, %v1589
    %v1591 = vlaneseq
    %v1592 = vshrl.u32 %v1591, 7
    %v1593 = vsub.s32 1, %v1592
    %v1594 = vrot.slane %v1585, %v1593
    %v1629 = vunpack.c.l.b16 %v1553
    %v1630 = vunpack.c.h.b16 %v1553
    %v1631 = vunpack.c.l.b16 %v1554
    %v1632 = vunpack.c.h.b16 %v1554
    %v1633 = vunpack.c.l.b16 %v1555
    %v1634 = vunpack.c.h.b16 %v1555
    %v1635 = vunpack.c.l.b16 %v1556
    %v1636 = vunpack.c.h.b16 %v1556
    %v1637 = vunpack.c.l.b16 %v1557
    %v1638 = vunpack.c.h.b16 %v1557
    %v1639 = vunpack.c.l.b16 %v1558
    %v1640 = vunpack.c.h.b16 %v1558
    %v1641 = vunpack.c.l.b16 %v1559
    %v1642 = vunpack.c.h.b16 %v1559
    %v1643 = vunpack.c.l.b16 %v1560
    %v1644 = vunpack.c.h.b16 %v1560
    %v1645 = vunpack.c.l.b16 %v1561
    %v1646 = vunpack.c.h.b16 %v1561
    %v1647 = vunpack.c.l.b16 %v1562
    %v1648 = vunpack.c.h.b16 %v1562
    %v1649 = vunpack.c.l.b16 %v1563
    %v1650 = vunpack.c.h.b16 %v1563
    %v1651 = vunpack.c.l.b16 %v1564
    %v1652 = vunpack.c.h.b16 %v1564
    %v1653 = vunpack.c.l.b16 %v1565
    %v1654 = vunpack.c.h.b16 %v1565
    %v1655 = vunpack.c.l.b16 %v1566
    %v1656 = vunpack.c.h.b16 %v1566
    %v1657 = vunpack.c.l.b16 %v1567
    %v1658 = vunpack.c.h.b16 %v1567
    %v1659 = vunpack.c.l.b16 %v1568
    %v1660 = vunpack.c.h.b16 %v1568
    %v1661 = vunpack.c.l.b16 %v1569
    %v1662 = vunpack.c.h.b16 %v1569
    %v1663 = vunpack.c.l.b16 %v1570
    %v1664 = vunpack.c.h.b16 %v1570
    %v1665 = vunpack.c.l.b16 %v1571
    %v1666 = vunpack.c.h.b16 %v1571
    %v1667 = vunpack.c.l.b16 %v1572
    %v1668 = vunpack.c.h.b16 %v1572
    %v1669 = vunpack.c.l.b16 %v1573
    %v1670 = vunpack.c.h.b16 %v1573
    %v1671 = vunpack.c.l.b16 %v1574
    %v1672 = vunpack.c.h.b16 %v1574
    %v1673 = vunpack.c.l.b16 %v1575
    %v1674 = vunpack.c.h.b16 %v1575
    %v1675 = vunpack.c.l.b16 %v1576
    %v1676 = vunpack.c.h.b16 %v1576
    %v1677 = vunpack.c.l.b16 %v1577
    %v1678 = vunpack.c.h.b16 %v1577
    %v1679 = vunpack.c.l.b16 %v1578
    %v1680 = vunpack.c.h.b16 %v1578
    %v1681 = vunpack.c.l.b16 %v1579
    %v1682 = vunpack.c.h.b16 %v1579
    %v1683 = vunpack.c.l.b16 %v1580
    %v1684 = vunpack.c.h.b16 %v1580
    %v1685 = vunpack.c.l.b16 %v1581
    %v1686 = vunpack.c.h.b16 %v1581
    %v1687 = vunpack.c.l.b16 %v1582
    %v1688 = vunpack.c.h.b16 %v1582
    %v1689 = vunpack.c.l.b16 %v1583
    %v1690 = vunpack.c.h.b16 %v1583
    %v1691 = vunpack.c.l.b16 %v1584
    %v1692 = vunpack.c.h.b16 %v1584
    %v1693 = vpack.c.b16 %v1631, %v1629
    %v1694 = vpack.c.b16 %v1632, %v1630
    %v1695 = vpack.c.b16 %v1635, %v1633
    %v1696 = vpack.c.b16 %v1636, %v1634
    %v1697 = vpack.c.b16 %v1639, %v1637
    %v1698 = vpack.c.b16 %v1640, %v1638
    %v1699 = vpack.c.b16 %v1643, %v1641
    %v1700 = vpack.c.b16 %v1644, %v1642
    %v1701 = vpack.c.b16 %v1647, %v1645
    %v1702 = vpack.c.b16 %v1648, %v1646
    %v1703 = vpack.c.b16 %v1651, %v1649
    %v1704 = vpack.c.b16 %v1652, %v1650
    %v1705 = vpack.c.b16 %v1655, %v1653
    %v1706 = vpack.c.b16 %v1656, %v1654
    %v1707 = vpack.c.b16 %v1659, %v1657
    %v1708 = vpack.c.b16 %v1660, %v1658
    %v1709 = vpack.c.b16 %v1663, %v1661
    %v1710 = vpack.c.b16 %v1664, %v1662
    %v1711 = vpack.c.b16 %v1667, %v1665
    %v1712 = vpack.c.b16 %v1668, %v1666
    %v1713 = vpack.c.b16 %v1671, %v1669
    %v1714 = vpack.c.b16 %v1672, %v1670
    %v1715 = vpack.c.b16 %v1675, %v1673
    %v1716 = vpack.c.b16 %v1676, %v1674
    %v1717 = vpack.c.b16 %v1679, %v1677
    %v1718 = vpack.c.b16 %v1680, %v1678
    %v1719 = vpack.c.b16 %v1683, %v1681
    %v1720 = vpack.c.b16 %v1684, %v1682
    %v1721 = vpack.c.b16 %v1687, %v1685
    %v1722 = vpack.c.b16 %v1688, %v1686
    %v1723 = vpack.c.b16 %v1691, %v1689
    %v1724 = vpack.c.b16 %v1692, %v1690
    %1757 = vmatprep.subr.bf16.mxu0 %v1694
    %1758 = vmatpush1.bf16.msra.mxu0 %v1693
    %1759 = vmatprep.subr.bf16.mxu0 %v1696
    %1760 = vmatpush1.bf16.msra.mxu0 %v1695
    %1761 = vmatprep.subr.bf16.mxu0 %v1698
    %1762 = vmatpush1.bf16.msra.mxu0 %v1697
    %1763 = vmatprep.subr.bf16.mxu0 %v1700
    %1764 = vmatpush1.bf16.msra.mxu0 %v1699
    %1765 = vmatprep.subr.bf16.mxu0 %v1702
    %1766 = vmatpush1.bf16.msra.mxu0 %v1701
    %1767 = vmatprep.subr.bf16.mxu0 %v1704
    %1768 = vmatpush1.bf16.msra.mxu0 %v1703
    %1769 = vmatprep.subr.bf16.mxu0 %v1706
    %1770 = vmatpush1.bf16.msra.mxu0 %v1705
    %1771 = vmatprep.subr.bf16.mxu0 %v1708
    %1772 = vmatpush1.bf16.msra.mxu0 %v1707
    %1773 = vmatprep.subr.bf16.mxu0 %v1710
    %1774 = vmatpush1.bf16.msra.mxu0 %v1709
    %1775 = vmatprep.subr.bf16.mxu0 %v1712
    %1776 = vmatpush1.bf16.msra.mxu0 %v1711
    %1777 = vmatprep.subr.bf16.mxu0 %v1714
    %1778 = vmatpush1.bf16.msra.mxu0 %v1713
    %1779 = vmatprep.subr.bf16.mxu0 %v1716
    %1780 = vmatpush1.bf16.msra.mxu0 %v1715
    %1781 = vmatprep.subr.bf16.mxu0 %v1718
    %1782 = vmatpush1.bf16.msra.mxu0 %v1717
    %1783 = vmatprep.subr.bf16.mxu0 %v1720
    %1784 = vmatpush1.bf16.msra.mxu0 %v1719
    %1785 = vmatprep.subr.bf16.mxu0 %v1722
    %1786 = vmatpush1.bf16.msra.mxu0 %v1721
    %1787 = vmatprep.subr.bf16.mxu0 %v1724
    %1788 = vmatpush1.bf16.msra.mxu0 %v1723
    %1789 = vmatprep.mubr.bf16.mxu0 %v1538
    %1790 = vmatmul.mubr.bf16.gmra.mrb[0].mxu0 %v1537
    %v1791 = vpop.f32.mrb[0].mxu0
    %v1792 = vadd.f32 %v1590, %v1791
    %v1793 = vpop.f32.mrb[0].mxu0
    %v1794 = vadd.f32 %v1594, %v1793
    %v1795 = vpop.f32.mrb[0].mxu0
    %v1796 = vadd.f32 %v1590, %v1795
    %v1797 = vpop.f32.mrb[0].mxu0
    %v1798 = vadd.f32 %v1594, %v1797
    %1799 = vmatprep.mubr.bf16.mxu0 %v1540
    %1800 = vmatmul.mubr.bf16.gmra.mrb[0].mxu0 %v1539
    %v1801 = vpop.f32.mrb[0].mxu0
    %v1802 = vadd.f32 %v1590, %v1801
    %v1803 = vpop.f32.mrb[0].mxu0
    %v1804 = vadd.f32 %v1594, %v1803
    %v1805 = vpop.f32.mrb[0].mxu0
    %v1806 = vadd.f32 %v1590, %v1805
    %v1807 = vpop.f32.mrb[0].mxu0
    %v1808 = vadd.f32 %v1594, %v1807
    %1809 = vmatprep.mubr.bf16.mxu0 %v1542
    %1810 = vmatmul.mubr.bf16.gmra.mrb[0].mxu0 %v1541
    %v1811 = vpop.f32.mrb[0].mxu0
    %v1812 = vadd.f32 %v1590, %v1811
    %v1813 = vpop.f32.mrb[0].mxu0
    %v1814 = vadd.f32 %v1594, %v1813
    %v1815 = vpop.f32.mrb[0].mxu0
    %v1816 = vadd.f32 %v1590, %v1815
    %v1817 = vpop.f32.mrb[0].mxu0
    %v1818 = vadd.f32 %v1594, %v1817
    %1819 = vmatprep.mubr.bf16.mxu0 %v1544
    %1820 = vmatmul.mubr.bf16.gmra.mrb[0].mxu0 %v1543
    %v1821 = vpop.f32.mrb[0].mxu0
    %v1822 = vadd.f32 %v1590, %v1821
    %v1823 = vpop.f32.mrb[0].mxu0
    %v1824 = vadd.f32 %v1594, %v1823
    %v1825 = vpop.f32.mrb[0].mxu0
    %v1826 = vadd.f32 %v1590, %v1825
    %v1827 = vpop.f32.mrb[0].mxu0
    %v1828 = vadd.f32 %v1594, %v1827
    %1829 = vmatprep.mubr.bf16.mxu0 %v1546
    %1830 = vmatmul.mubr.bf16.gmra.mrb[0].mxu0 %v1545
    %v1831 = vpop.f32.mrb[0].mxu0
    %v1832 = vadd.f32 %v1590, %v1831
    %v1833 = vpop.f32.mrb[0].mxu0
    %v1834 = vadd.f32 %v1594, %v1833
    %v1835 = vpop.f32.mrb[0].mxu0
    %v1836 = vadd.f32 %v1590, %v1835
    %v1837 = vpop.f32.mrb[0].mxu0
    %v1838 = vadd.f32 %v1594, %v1837
    %1839 = vmatprep.mubr.bf16.mxu0 %v1548
    %1840 = vmatmul.mubr.bf16.gmra.mrb[0].mxu0 %v1547
    %v1841 = vpop.f32.mrb[0].mxu0
    %v1842 = vadd.f32 %v1590, %v1841
    %v1843 = vpop.f32.mrb[0].mxu0
    %v1844 = vadd.f32 %v1594, %v1843
    %v1845 = vpop.f32.mrb[0].mxu0
    %v1846 = vadd.f32 %v1590, %v1845
    %v1847 = vpop.f32.mrb[0].mxu0
    %v1848 = vadd.f32 %v1594, %v1847
    %1849 = vmatprep.mubr.bf16.mxu0 %v1550
    %1850 = vmatmul.mubr.bf16.gmra.mrb[0].mxu0 %v1549
    %v1851 = vpop.f32.mrb[0].mxu0
    %v1852 = vadd.f32 %v1590, %v1851
    %v1853 = vpop.f32.mrb[0].mxu0
    %v1854 = vadd.f32 %v1594, %v1853
    %v1855 = vpop.f32.mrb[0].mxu0
    %v1856 = vadd.f32 %v1590, %v1855
    %v1857 = vpop.f32.mrb[0].mxu0
    %v1858 = vadd.f32 %v1594, %v1857
    %1859 = vmatprep.mubr.bf16.mxu0 %v1552
    %1860 = vmatmul.mubr.bf16.gmra.mrb[0].mxu0 %v1551
    %v1861 = vpop.f32.mrb[0].mxu0
    %v1862 = vadd.f32 %v1590, %v1861
    %v1863 = vpop.f32.mrb[0].mxu0
    %v1864 = vadd.f32 %v1594, %v1863
    %v1865 = vpop.f32.mrb[0].mxu0
    %v1866 = vadd.f32 %v1590, %v1865
    %v1867 = vpop.f32.mrb[0].mxu0
    %v1868 = vadd.f32 %v1594, %v1867
    %1869 = vdwg.mxu0
    %v1870 = vmin.f32 %v1792, 0.0
    %v1871 = vmin.f32 %v1794, 0.0
    %v1872 = vmin.f32 %v1796, 0.0
    %v1873 = vmin.f32 %v1798, 0.0
    %v1874 = vmin.f32 %v1802, 0.0
    %v1875 = vmin.f32 %v1804, 0.0
    %v1876 = vmin.f32 %v1806, 0.0
    %v1877 = vmin.f32 %v1808, 0.0
    %v1878 = vmin.f32 %v1812, 0.0
    %v1879 = vmin.f32 %v1814, 0.0
    %v1880 = vmin.f32 %v1816, 0.0
    %v1881 = vmin.f32 %v1818, 0.0
    %v1882 = vmin.f32 %v1822, 0.0
    %v1883 = vmin.f32 %v1824, 0.0
    %v1884 = vmin.f32 %v1826, 0.0
    %v1885 = vmin.f32 %v1828, 0.0
    %v1886 = vmin.f32 %v1832, 0.0
    %v1887 = vmin.f32 %v1834, 0.0
    %v1888 = vmin.f32 %v1836, 0.0
    %v1889 = vmin.f32 %v1838, 0.0
    %v1890 = vmin.f32 %v1842, 0.0
    %v1891 = vmin.f32 %v1844, 0.0
    %v1892 = vmin.f32 %v1846, 0.0
    %v1893 = vmin.f32 %v1848, 0.0
    %v1894 = vmin.f32 %v1852, 0.0
    %v1895 = vmin.f32 %v1854, 0.0
    %v1896 = vmin.f32 %v1856, 0.0
    %v1897 = vmin.f32 %v1858, 0.0
    %v1898 = vmin.f32 %v1862, 0.0
    %v1899 = vmin.f32 %v1864, 0.0
    %v1900 = vmin.f32 %v1866, 0.0
    %v1901 = vmin.f32 %v1868, 0.0
    %v1902 = vmul.f32 %v1870, 1.442695
    %v1903 = vpow.pop %v1902
    %v1904 = vmul.f32 %v1871, 1.442695
    %v1905 = vpow.pop %v1904
    %v1906 = vmul.f32 %v1872, 1.442695
    %v1907 = vpow.pop %v1906
    %v1908 = vmul.f32 %v1873, 1.442695
    %v1909 = vpow.pop %v1908
    %v1910 = vmul.f32 %v1874, 1.442695
    %v1911 = vpow.pop %v1910
    %v1912 = vmul.f32 %v1875, 1.442695
    %v1913 = vpow.pop %v1912
    %v1914 = vmul.f32 %v1876, 1.442695
    %v1915 = vpow.pop %v1914
    %v1916 = vmul.f32 %v1877, 1.442695
    %v1917 = vpow.pop %v1916
    %v1918 = vmul.f32 %v1878, 1.442695
    %v1919 = vpow.pop %v1918
    %v1920 = vmul.f32 %v1879, 1.442695
    %v1921 = vpow.pop %v1920
    %v1922 = vmul.f32 %v1880, 1.442695
    %v1923 = vpow.pop %v1922
    %v1924 = vmul.f32 %v1881, 1.442695
    %v1925 = vpow.pop %v1924
    %v1926 = vmul.f32 %v1882, 1.442695
    %v1927 = vpow.pop %v1926
    %v1928 = vmul.f32 %v1883, 1.442695
    %v1929 = vpow.pop %v1928
    %v1930 = vmul.f32 %v1884, 1.442695
    %v1931 = vpow.pop %v1930
    %v1932 = vmul.f32 %v1885, 1.442695
    %v1933 = vpow.pop %v1932
    %v1934 = vmul.f32 %v1886, 1.442695
    %v1935 = vpow.pop %v1934
    %v1936 = vmul.f32 %v1887, 1.442695
    %v1937 = vpow.pop %v1936
    %v1938 = vmul.f32 %v1888, 1.442695
    %v1939 = vpow.pop %v1938
    %v1940 = vmul.f32 %v1889, 1.442695
    %v1941 = vpow.pop %v1940
    %v1942 = vmul.f32 %v1890, 1.442695
    %v1943 = vpow.pop %v1942
    %v1944 = vmul.f32 %v1891, 1.442695
    %v1945 = vpow.pop %v1944
    %v1946 = vmul.f32 %v1892, 1.442695
    %v1947 = vpow.pop %v1946
    %v1948 = vmul.f32 %v1893, 1.442695
    %v1949 = vpow.pop %v1948
    %v1950 = vmul.f32 %v1894, 1.442695
    %v1951 = vpow.pop %v1950
    %v1952 = vmul.f32 %v1895, 1.442695
    %v1953 = vpow.pop %v1952
    %v1954 = vmul.f32 %v1896, 1.442695
    %v1955 = vpow.pop %v1954
    %v1956 = vmul.f32 %v1897, 1.442695
    %v1957 = vpow.pop %v1956
    %v1958 = vmul.f32 %v1898, 1.442695
    %v1959 = vpow.pop %v1958
    %v1960 = vmul.f32 %v1899, 1.442695
    %v1961 = vpow.pop %v1960
    %v1962 = vmul.f32 %v1900, 1.442695
    %v1963 = vpow.pop %v1962
    %v1964 = vmul.f32 %v1901, 1.442695
    %v1965 = vpow.pop %v1964
    %v1966 = vmul.f32 %v1903, 1.7580993
    %v1967 = vmul.f32 %v1905, 1.7580993
    %v1968 = vmul.f32 %v1907, 1.7580993
    %v1969 = vmul.f32 %v1909, 1.7580993
    %v1970 = vmul.f32 %v1911, 1.7580993
    %v1971 = vmul.f32 %v1913, 1.7580993
    %v1972 = vmul.f32 %v1915, 1.7580993
    %v1973 = vmul.f32 %v1917, 1.7580993
    %v1974 = vmul.f32 %v1919, 1.7580993
    %v1975 = vmul.f32 %v1921, 1.7580993
    %v1976 = vmul.f32 %v1923, 1.7580993
    %v1977 = vmul.f32 %v1925, 1.7580993
    %v1978 = vmul.f32 %v1927, 1.7580993
    %v1979 = vmul.f32 %v1929, 1.7580993
    %v1980 = vmul.f32 %v1931, 1.7580993
    %v1981 = vmul.f32 %v1933, 1.7580993
    %v1982 = vmul.f32 %v1935, 1.7580993
    %v1983 = vmul.f32 %v1937, 1.7580993
    %v1984 = vmul.f32 %v1939, 1.7580993
    %v1985 = vmul.f32 %v1941, 1.7580993
    %v1986 = vmul.f32 %v1943, 1.7580993
    %v1987 = vmul.f32 %v1945, 1.7580993
    %v1988 = vmul.f32 %v1947, 1.7580993
    %v1989 = vmul.f32 %v1949, 1.7580993
    %v1990 = vmul.f32 %v1951, 1.7580993
    %v1991 = vmul.f32 %v1953, 1.7580993
    %v1992 = vmul.f32 %v1955, 1.7580993
    %v1993 = vmul.f32 %v1957, 1.7580993
    %v1994 = vmul.f32 %v1959, 1.7580993
    %v1995 = vmul.f32 %v1961, 1.7580993
    %v1996 = vmul.f32 %v1963, 1.7580993
    %v1997 = vmul.f32 %v1965, 1.7580993
    %v1998 = vsub.f32 %v1966, 1.7580993
    %v1999 = vsub.f32 %v1967, 1.7580993
    %v2000 = vsub.f32 %v1968, 1.7580993
    %v2001 = vsub.f32 %v1969, 1.7580993
    %v2002 = vsub.f32 %v1970, 1.7580993
    %v2003 = vsub.f32 %v1971, 1.7580993
    %v2004 = vsub.f32 %v1972, 1.7580993
    %v2005 = vsub.f32 %v1973, 1.7580993
    %v2006 = vsub.f32 %v1974, 1.7580993
    %v2007 = vsub.f32 %v1975, 1.7580993
    %v2008 = vsub.f32 %v1976, 1.7580993
    %v2009 = vsub.f32 %v1977, 1.7580993
    %v2010 = vsub.f32 %v1978, 1.7580993
    %v2011 = vsub.f32 %v1979, 1.7580993
    %v2012 = vsub.f32 %v1980, 1.7580993
    %v2013 = vsub.f32 %v1981, 1.7580993
    %v2014 = vsub.f32 %v1982, 1.7580993
    %v2015 = vsub.f32 %v1983, 1.7580993
    %v2016 = vsub.f32 %v1984, 1.7580993
    %v2017 = vsub.f32 %v1985, 1.7580993
    %v2018 = vsub.f32 %v1986, 1.7580993
    %v2019 = vsub.f32 %v1987, 1.7580993
    %v2020 = vsub.f32 %v1988, 1.7580993
    %v2021 = vsub.f32 %v1989, 1.7580993
    %v2022 = vsub.f32 %v1990, 1.7580993
    %v2023 = vsub.f32 %v1991, 1.7580993
    %v2024 = vsub.f32 %v1992, 1.7580993
    %v2025 = vsub.f32 %v1993, 1.7580993
    %v2026 = vsub.f32 %v1994, 1.7580993
    %v2027 = vsub.f32 %v1995, 1.7580993
    %v2028 = vsub.f32 %v1996, 1.7580993
    %v2029 = vsub.f32 %v1997, 1.7580993
    %vm2030 = vcmp.gt.f32.partialorder %v1792, 0.0
    %vm2031 = vcmp.gt.f32.partialorder %v1794, 0.0
    %vm2032 = vcmp.gt.f32.partialorder %v1796, 0.0
    %vm2033 = vcmp.gt.f32.partialorder %v1798, 0.0
    %vm2034 = vcmp.gt.f32.partialorder %v1802, 0.0
    %vm2035 = vcmp.gt.f32.partialorder %v1804, 0.0
    %vm2036 = vcmp.gt.f32.partialorder %v1806, 0.0
    %vm2037 = vcmp.gt.f32.partialorder %v1808, 0.0
    %vm2038 = vcmp.gt.f32.partialorder %v1812, 0.0
    %vm2039 = vcmp.gt.f32.partialorder %v1814, 0.0
    %vm2040 = vcmp.gt.f32.partialorder %v1816, 0.0
    %vm2041 = vcmp.gt.f32.partialorder %v1818, 0.0
    %vm2042 = vcmp.gt.f32.partialorder %v1822, 0.0
    %vm2043 = vcmp.gt.f32.partialorder %v1824, 0.0
    %vm2044 = vcmp.gt.f32.partialorder %v1826, 0.0
    %vm2045 = vcmp.gt.f32.partialorder %v1828, 0.0
    %vm2046 = vcmp.gt.f32.partialorder %v1832, 0.0
    %vm2047 = vcmp.gt.f32.partialorder %v1834, 0.0
    %vm2048 = vcmp.gt.f32.partialorder %v1836, 0.0
    %vm2049 = vcmp.gt.f32.partialorder %v1838, 0.0
    %vm2050 = vcmp.gt.f32.partialorder %v1842, 0.0
    %vm2051 = vcmp.gt.f32.partialorder %v1844, 0.0
    %vm2052 = vcmp.gt.f32.partialorder %v1846, 0.0
    %vm2053 = vcmp.gt.f32.partialorder %v1848, 0.0
    %vm2054 = vcmp.gt.f32.partialorder %v1852, 0.0
    %vm2055 = vcmp.gt.f32.partialorder %v1854, 0.0
    %vm2056 = vcmp.gt.f32.partialorder %v1856, 0.0
    %vm2057 = vcmp.gt.f32.partialorder %v1858, 0.0
    %vm2058 = vcmp.gt.f32.partialorder %v1862, 0.0
    %vm2059 = vcmp.gt.f32.partialorder %v1864, 0.0
    %vm2060 = vcmp.gt.f32.partialorder %v1866, 0.0
    %vm2061 = vcmp.gt.f32.partialorder %v1868, 0.0
    %v2062 = vmul.f32 %v1792, 1.050701
    %v2063 = vmul.f32 %v1794, 1.050701
    %v2064 = vmul.f32 %v1796, 1.050701
    %v2065 = vmul.f32 %v1798, 1.050701
    %v2066 = vmul.f32 %v1802, 1.050701
    %v2067 = vmul.f32 %v1804, 1.050701
    %v2068 = vmul.f32 %v1806, 1.050701
    %v2069 = vmul.f32 %v1808, 1.050701
    %v2070 = vmul.f32 %v1812, 1.050701
    %v2071 = vmul.f32 %v1814, 1.050701
    %v2072 = vmul.f32 %v1816, 1.050701
    %v2073 = vmul.f32 %v1818, 1.050701
    %v2074 = vmul.f32 %v1822, 1.050701
    %v2075 = vmul.f32 %v1824, 1.050701
    %v2076 = vmul.f32 %v1826, 1.050701
    %v2077 = vmul.f32 %v1828, 1.050701
    %v2078 = vmul.f32 %v1832, 1.050701
    %v2079 = vmul.f32 %v1834, 1.050701
    %v2080 = vmul.f32 %v1836, 1.050701
    %v2081 = vmul.f32 %v1838, 1.050701
    %v2082 = vmul.f32 %v1842, 1.050701
    %v2083 = vmul.f32 %v1844, 1.050701
    %v2084 = vmul.f32 %v1846, 1.050701
    %v2085 = vmul.f32 %v1848, 1.050701
    %v2086 = vmul.f32 %v1852, 1.050701
    %v2087 = vmul.f32 %v1854, 1.050701
    %v2088 = vmul.f32 %v1856, 1.050701
    %v2089 = vmul.f32 %v1858, 1.050701
    %v2090 = vmul.f32 %v1862, 1.050701
    %v2091 = vmul.f32 %v1864, 1.050701
    %v2092 = vmul.f32 %v1866, 1.050701
    %v2093 = vmul.f32 %v1868, 1.050701
    %v2094 = vsel %vm2030, %v2062, %v1998
    %v2095 = vsel %vm2031, %v2063, %v1999
    %v2096 = vsel %vm2032, %v2064, %v2000
    %v2097 = vsel %vm2033, %v2065, %v2001
    %v2098 = vsel %vm2034, %v2066, %v2002
    %v2099 = vsel %vm2035, %v2067, %v2003
    %v2100 = vsel %vm2036, %v2068, %v2004
    %v2101 = vsel %vm2037, %v2069, %v2005
    %v2102 = vsel %vm2038, %v2070, %v2006
    %v2103 = vsel %vm2039, %v2071, %v2007
    %v2104 = vsel %vm2040, %v2072, %v2008
    %v2105 = vsel %vm2041, %v2073, %v2009
    %v2106 = vsel %vm2042, %v2074, %v2010
    %v2107 = vsel %vm2043, %v2075, %v2011
    %v2108 = vsel %vm2044, %v2076, %v2012
    %v2109 = vsel %vm2045, %v2077, %v2013
    %v2110 = vsel %vm2046, %v2078, %v2014
    %v2111 = vsel %vm2047, %v2079, %v2015
    %v2112 = vsel %vm2048, %v2080, %v2016
    %v2113 = vsel %vm2049, %v2081, %v2017
    %v2114 = vsel %vm2050, %v2082, %v2018
    %v2115 = vsel %vm2051, %v2083, %v2019
    %v2116 = vsel %vm2052, %v2084, %v2020
    %v2117 = vsel %vm2053, %v2085, %v2021
    %v2118 = vsel %vm2054, %v2086, %v2022
    %v2119 = vsel %vm2055, %v2087, %v2023
    %v2120 = vsel %vm2056, %v2088, %v2024
    %v2121 = vsel %vm2057, %v2089, %v2025
    %v2122 = vsel %vm2058, %v2090, %v2026
    %v2123 = vsel %vm2059, %v2091, %v2027
    %v2124 = vsel %vm2060, %v2092, %v2028
    %v2125 = vsel %vm2061, %v2093, %v2029
    %v2126 = vld [vmem:[%s7] sm:$0x3]
    %v2128 = vlaneseq
    %v2129 = vshrl.u32 %v2128, 7
    %v2130 = vsub.s32 0, %v2129
    %v2131 = vrot.slane %v2126, %v2130
    %v2132 = vlaneseq
    %v2133 = vshrl.u32 %v2132, 7
    %v2134 = vsub.s32 1, %v2133
    %v2135 = vrot.slane %v2126, %v2134
    %v2138 = vmul.f32 %v2094, %v2131
    %v2139 = vmul.f32 %v2095, %v2135
    %v2140 = vmul.f32 %v2096, %v2131
    %v2141 = vmul.f32 %v2097, %v2135
    %v2142 = vmul.f32 %v2098, %v2131
    %v2143 = vmul.f32 %v2099, %v2135
    %v2144 = vmul.f32 %v2100, %v2131
    %v2145 = vmul.f32 %v2101, %v2135
    %v2146 = vmul.f32 %v2102, %v2131
    %v2147 = vmul.f32 %v2103, %v2135
    %v2148 = vmul.f32 %v2104, %v2131
    %v2149 = vmul.f32 %v2105, %v2135
    %v2150 = vmul.f32 %v2106, %v2131
    %v2151 = vmul.f32 %v2107, %v2135
    %v2152 = vmul.f32 %v2108, %v2131
    %v2153 = vmul.f32 %v2109, %v2135
    %v2154 = vmul.f32 %v2110, %v2131
    %v2155 = vmul.f32 %v2111, %v2135
    %v2156 = vmul.f32 %v2112, %v2131
    %v2157 = vmul.f32 %v2113, %v2135
    %v2158 = vmul.f32 %v2114, %v2131
    %v2159 = vmul.f32 %v2115, %v2135
    %v2160 = vmul.f32 %v2116, %v2131
    %v2161 = vmul.f32 %v2117, %v2135
    %v2162 = vmul.f32 %v2118, %v2131
    %v2163 = vmul.f32 %v2119, %v2135
    %v2164 = vmul.f32 %v2120, %v2131
    %v2165 = vmul.f32 %v2121, %v2135
    %v2166 = vmul.f32 %v2122, %v2131
    %v2167 = vmul.f32 %v2123, %v2135
    %v2168 = vmul.f32 %v2124, %v2131
    %v2169 = vmul.f32 %v2125, %v2135
    %v2170 = vadd.f32 %v2138, %v2139
    %2171 = vadd.xlane.f32.xlu0 %v2170
    %v2172 = vpop.xlane.xlu0 %2171
    %v2173 = vadd.f32 %v2140, %v2141
    %2174 = vadd.xlane.f32.xlu0 %v2173
    %v2175 = vpop.xlane.xlu0 %2174
    %v2176 = vadd.f32 %v2142, %v2143
    %2177 = vadd.xlane.f32.xlu0 %v2176
    %v2178 = vpop.xlane.xlu0 %2177
    %v2179 = vadd.f32 %v2144, %v2145
    %2180 = vadd.xlane.f32.xlu0 %v2179
    %v2181 = vpop.xlane.xlu0 %2180
    %v2182 = vadd.f32 %v2146, %v2147
    %2183 = vadd.xlane.f32.xlu0 %v2182
    %v2184 = vpop.xlane.xlu0 %2183
    %v2185 = vadd.f32 %v2148, %v2149
    %2186 = vadd.xlane.f32.xlu0 %v2185
    %v2187 = vpop.xlane.xlu0 %2186
    %v2188 = vadd.f32 %v2150, %v2151
    %2189 = vadd.xlane.f32.xlu0 %v2188
    %v2190 = vpop.xlane.xlu0 %2189
    %v2191 = vadd.f32 %v2152, %v2153
    %2192 = vadd.xlane.f32.xlu0 %v2191
    %v2193 = vpop.xlane.xlu0 %2192
    %v2194 = vadd.f32 %v2154, %v2155
    %2195 = vadd.xlane.f32.xlu0 %v2194
    %v2196 = vpop.xlane.xlu0 %2195
    %v2197 = vadd.f32 %v2156, %v2157
    %2198 = vadd.xlane.f32.xlu0 %v2197
    %v2199 = vpop.xlane.xlu0 %2198
    %v2200 = vadd.f32 %v2158, %v2159
    %2201 = vadd.xlane.f32.xlu0 %v2200
    %v2202 = vpop.xlane.xlu0 %2201
    %v2203 = vadd.f32 %v2160, %v2161
    %2204 = vadd.xlane.f32.xlu0 %v2203
    %v2205 = vpop.xlane.xlu0 %2204
    %v2206 = vadd.f32 %v2162, %v2163
    %2207 = vadd.xlane.f32.xlu0 %v2206
    %v2208 = vpop.xlane.xlu0 %2207
    %v2209 = vadd.f32 %v2164, %v2165
    %2210 = vadd.xlane.f32.xlu0 %v2209
    %v2211 = vpop.xlane.xlu0 %2210
    %v2212 = vadd.f32 %v2166, %v2167
    %2213 = vadd.xlane.f32.xlu0 %v2212
    %v2214 = vpop.xlane.xlu0 %2213
    %v2215 = vadd.f32 %v2168, %v2169
    %2216 = vadd.xlane.f32.xlu0 %v2215
    %v2217 = vpop.xlane.xlu0 %2216
    %v2218 = vld [vmem:[#allocation2] sm:$0x1]
    %v2220 = vlaneseq
    %v2221 = vshrl.u32 %v2220, 7
    %v2222 = vsub.s32 0, %v2221
    %v2223 = vrot.slane %v2218, %v2222
    %v2225 = vadd.f32 %v2172, %v2223
    %v2226 = vadd.f32 %v2175, %v2223
    %v2227 = vadd.f32 %v2178, %v2223
    %v2228 = vadd.f32 %v2181, %v2223
    %v2229 = vadd.f32 %v2184, %v2223
    %v2230 = vadd.f32 %v2187, %v2223
    %v2231 = vadd.f32 %v2190, %v2223
    %v2232 = vadd.f32 %v2193, %v2223
    %v2233 = vadd.f32 %v2196, %v2223
    %v2234 = vadd.f32 %v2199, %v2223
    %v2235 = vadd.f32 %v2202, %v2223
    %v2236 = vadd.f32 %v2205, %v2223
    %v2237 = vadd.f32 %v2208, %v2223
    %v2238 = vadd.f32 %v2211, %v2223
    %v2239 = vadd.f32 %v2214, %v2223
    %v2240 = vadd.f32 %v2217, %v2223
    %v2241 = vsub.f32 0.0, %v2225
    %v2242 = vsub.f32 0.0, %v2226
    %v2243 = vsub.f32 0.0, %v2227
    %v2244 = vsub.f32 0.0, %v2228
    %v2245 = vsub.f32 0.0, %v2229
    %v2246 = vsub.f32 0.0, %v2230
    %v2247 = vsub.f32 0.0, %v2231
    %v2248 = vsub.f32 0.0, %v2232
    %v2249 = vsub.f32 0.0, %v2233
    %v2250 = vsub.f32 0.0, %v2234
    %v2251 = vsub.f32 0.0, %v2235
    %v2252 = vsub.f32 0.0, %v2236
    %v2253 = vsub.f32 0.0, %v2237
    %v2254 = vsub.f32 0.0, %v2238
    %v2255 = vsub.f32 0.0, %v2239
    %v2256 = vsub.f32 0.0, %v2240
    %v2257 = vmin.f32 %v2241, 80.0
    %v2258 = vmin.f32 %v2242, 80.0
    %v2259 = vmin.f32 %v2243, 80.0
    %v2260 = vmin.f32 %v2244, 80.0
    %v2261 = vmin.f32 %v2245, 80.0
    %v2262 = vmin.f32 %v2246, 80.0
    %v2263 = vmin.f32 %v2247, 80.0
    %v2264 = vmin.f32 %v2248, 80.0
    %v2265 = vmin.f32 %v2249, 80.0
    %v2266 = vmin.f32 %v2250, 80.0
    %v2267 = vmin.f32 %v2251, 80.0
    %v2268 = vmin.f32 %v2252, 80.0
    %v2269 = vmin.f32 %v2253, 80.0
    %v2270 = vmin.f32 %v2254, 80.0
    %v2271 = vmin.f32 %v2255, 80.0
    %v2272 = vmin.f32 %v2256, 80.0
    %v2273 = vmul.f32 %v2257, 1.442695
    %v2274 = vpow.pop %v2273
    %v2275 = vmul.f32 %v2258, 1.442695
    %v2276 = vpow.pop %v2275
    %v2277 = vmul.f32 %v2259, 1.442695
    %v2278 = vpow.pop %v2277
    %v2279 = vmul.f32 %v2260, 1.442695
    %v2280 = vpow.pop %v2279
    %v2281 = vmul.f32 %v2261, 1.442695
    %v2282 = vpow.pop %v2281
    %v2283 = vmul.f32 %v2262, 1.442695
    %v2284 = vpow.pop %v2283
    %v2285 = vmul.f32 %v2263, 1.442695
    %v2286 = vpow.pop %v2285
    %v2287 = vmul.f32 %v2264, 1.442695
    %v2288 = vpow.pop %v2287
    %v2289 = vmul.f32 %v2265, 1.442695
    %v2290 = vpow.pop %v2289
    %v2291 = vmul.f32 %v2266, 1.442695
    %v2292 = vpow.pop %v2291
    %v2293 = vmul.f32 %v2267, 1.442695
    %v2294 = vpow.pop %v2293
    %v2295 = vmul.f32 %v2268, 1.442695
    %v2296 = vpow.pop %v2295
    %v2297 = vmul.f32 %v2269, 1.442695
    %v2298 = vpow.pop %v2297
    %v2299 = vmul.f32 %v2270, 1.442695
    %v2300 = vpow.pop %v2299
    %v2301 = vmul.f32 %v2271, 1.442695
    %v2302 = vpow.pop %v2301
    %v2303 = vmul.f32 %v2272, 1.442695
    %v2304 = vpow.pop %v2303
    %v2305 = vadd.f32 %v2274, 1.0
    %v2306 = vadd.f32 %v2276, 1.0
    %v2307 = vadd.f32 %v2278, 1.0
    %v2308 = vadd.f32 %v2280, 1.0
    %v2309 = vadd.f32 %v2282, 1.0
    %v2310 = vadd.f32 %v2284, 1.0
    %v2311 = vadd.f32 %v2286, 1.0
    %v2312 = vadd.f32 %v2288, 1.0
    %v2313 = vadd.f32 %v2290, 1.0
    %v2314 = vadd.f32 %v2292, 1.0
    %v2315 = vadd.f32 %v2294, 1.0
    %v2316 = vadd.f32 %v2296, 1.0
    %v2317 = vadd.f32 %v2298, 1.0
    %v2318 = vadd.f32 %v2300, 1.0
    %v2319 = vadd.f32 %v2302, 1.0
    %v2320 = vadd.f32 %v2304, 1.0
    %v2321 = vrcp.pop %v2305
    %v2322 = vrcp.pop %v2306
    %v2323 = vrcp.pop %v2307
    %v2324 = vrcp.pop %v2308
    %v2325 = vrcp.pop %v2309
    %v2326 = vrcp.pop %v2310
    %v2327 = vrcp.pop %v2311
    %v2328 = vrcp.pop %v2312
    %v2329 = vrcp.pop %v2313
    %v2330 = vrcp.pop %v2314
    %v2331 = vrcp.pop %v2315
    %v2332 = vrcp.pop %v2316
    %v2333 = vrcp.pop %v2317
    %v2334 = vrcp.pop %v2318
    %v2335 = vrcp.pop %v2319
    %v2336 = vrcp.pop %v2320
    %vm2337 = vcmask 7168
    %2338 = vst.msk [vmem:[%s9] sm:$0xff] %vm2337, %v2321
    %2339 = vst.msk [vmem:[%s9 + $0x8] sm:$0xff] %vm2337, %v2322
    %2340 = vst.msk [vmem:[%s9 + $0x10] sm:$0xff] %vm2337, %v2323
    %2341 = vst.msk [vmem:[%s9 + $0x18] sm:$0xff] %vm2337, %v2324
    %2342 = vst.msk [vmem:[%s9 + $0x20] sm:$0xff] %vm2337, %v2325
    %2343 = vst.msk [vmem:[%s9 + $0x28] sm:$0xff] %vm2337, %v2326
    %2344 = vst.msk [vmem:[%s9 + $0x30] sm:$0xff] %vm2337, %v2327
    %2345 = vst.msk [vmem:[%s9 + $0x38] sm:$0xff] %vm2337, %v2328
    %2346 = vst.msk [vmem:[%s9 + $0x40] sm:$0xff] %vm2337, %v2329
    %2347 = vst.msk [vmem:[%s9 + $0x48] sm:$0xff] %vm2337, %v2330
    %2348 = vst.msk [vmem:[%s9 + $0x50] sm:$0xff] %vm2337, %v2331
    %2349 = vst.msk [vmem:[%s9 + $0x58] sm:$0xff] %vm2337, %v2332
    %2350 = vst.msk [vmem:[%s9 + $0x60] sm:$0xff] %vm2337, %v2333
    %2351 = vst.msk [vmem:[%s9 + $0x68] sm:$0xff] %vm2337, %v2334
    %2352 = vst.msk [vmem:[%s9 + $0x70] sm:$0xff] %vm2337, %v2335
    %2353 = vst.msk [vmem:[%s9 + $0x78] sm:$0xff] %vm2337, %v2336
    // Predicated region
    $region46: #{tpu_custom_call.1} parent=1 // pred_check
      _
    $region47: #{tpu_custom_call.1} parent=1 // pred_check_branch
      %2355 = sbr.rel (0) target = $region49
    $region48: #{tpu_custom_call.1} parent=1 // pred_region
      _
    $region49: #{tpu_custom_call.1} parent=1 // pred_fallthru
      _
    // Predicated region
    $region50: #{tpu_custom_call.1} parent=1 // pred_check
      _
    $region51: #{tpu_custom_call.1} parent=1 // pred_check_branch
      %2357 = sbr.rel (0) target = $region53
    $region52: #{tpu_custom_call.1} parent=1 // pred_region
      _
    $region53: #{tpu_custom_call.1} parent=1 // pred_fallthru
      _
    %2358 = vsyncpa [#allocation4], 1
    %2359 = vsyncpa [#allocation6], 1

</llo_original>
